<compile_context>
chip_gen: v6e
topology: v6e:2x2x1
jax: 0.10.0
libtpu: 0.0.40
codegen_flags: <defaults>
</compile_context>

<pallas_src>
import functools

import numpy as np
import jax
import jax.numpy as jnp
from jax.experimental import pallas as pl
from jax.experimental.pallas import tpu as pltpu

LANES = 128                      # lane width; requires N + 1 <= 128
SUBLANES = 8                     # sublane granularity of one f32 vreg
NEG = -1e30                      # "minus infinity" sentinel (finite: no inf-inf NaNs)
VMEM_CAP_BYTES = 48 * 1024 * 1024   # stay well under v7x's 64 MiB per-TC VMEM
STATIC_UNROLL_MAX_D = 64


def _round_up(x, m):
    return -(-x // m) * m


def _nw_forward_kernel(N, M, D, static_unroll, inp_ref, out_ref):
    """Anti-diagonal wavefront NW forward pass.

    inp_ref : (3, D, Bblk, LANES) skewed inputs (theta / A0 / A1 terms, boundary folded
              in via NEG sentinels and gap increments).
    out_ref : (Bblk, LANES) = final anti-diagonal; V[N, M] sits at lane N.

    The wavefront is carried in registers; VMEM is only read (one (Bblk, 128) slab per
    quantity per diagonal) and written once at the end.
    """
    Bblk, L = out_ref.shape
    lane = jax.lax.broadcasted_iota(jnp.int32, (Bblk, L), 1)
    zero = jnp.zeros((Bblk, L), jnp.float32)

    def step(d, prev1, prev1_sh, prev2_sh):
        # prev1    = W[d-1]            -> V[i, j-1]
        # prev1_sh = roll(W[d-1], 1)   -> V[i-1, j]
        # prev2_sh = roll(W[d-2], 1)   -> V[i-1, j-1]
        arg_m = inp_ref[0, d] + prev2_sh      # theta[i-1, j-1] + V[i-1, j-1]
        arg_x = inp_ref[1, d] + prev1_sh      # A[0, i-1, j-1]  + V[i-1, j]
        arg_y = inp_ref[2, d] + prev1         # A[1, i-j, 0]    + V[i, j-1]

        # smoothed max == logsumexp (matches _soft_max_numba exactly); boundary lanes
        # have two args at ~NEG so they reduce exactly to the surviving gap extension.
        mx = jnp.maximum(jnp.maximum(arg_x, arg_m), arg_y)
        v = mx + jnp.log(jnp.exp(arg_x - mx) + jnp.exp(arg_m - mx)
                         + jnp.exp(arg_y - mx))

        # kept lanes on diagonal d: interior cells plus the two boundary cells
        #   lane 0 (V[0, d], d <= M)  and  lane d (V[d, 0], d <= N)
        lo = jnp.maximum(0, d - M)
        hi = jnp.minimum(N, d)
        keep = (lane >= lo) & (lane <= hi)
        cur = jnp.where(keep, v, zero)        # zero off-grid lanes: no garbage leaks
        # next step's prev2_sh is exactly this step's prev1_sh -> 1 roll / iteration
        return cur, pltpu.roll(cur, shift=1, axis=1), prev1_sh

    if static_unroll:
        prev1 = prev1_sh = prev2_sh = zero    # W[0] is all zeros (V[0,0] = 0)
        for d in range(1, D):
            prev1, prev1_sh, prev2_sh = step(d, prev1, prev1_sh, prev2_sh)
        last = prev1
    else:
        last, _, _ = jax.lax.fori_loop(
            1, D, lambda d, c: step(d, *c), (zero, zero, zero), unroll=8)

    out_ref[...] = last


def _build_skewed_stacked(theta, A):
    """Gather-free skewed (anti-diagonal, lane-major) inputs for the wavefront kernel.

    theta: (B, N, M), A: (B, 2, N, M)  ->  (B, 3, LANES, D) float32 with
      out[b, 0, i, d] = theta[b, i-1, d-i-1]      (m-arg)   at interior cells
      out[b, 1, i, d] = A[b, 0, i-1, d-i-1]       (x-arg)
      out[b, 2, i, d] = A[b, 1, (2i-d) % N, 0]    (y-arg)
    with the DP boundary folded in:
      lane 0, d=1..M : (NEG, NEG, A[0,0,d-1])  ->  V[0,d] = A[0,0,d-1] + V[0,d-1]
      lane d, d=1..N : (NEG, A[1,d-1,0], NEG)  ->  V[d,0] = A[1,d-1,0] + V[d-1,0]
    Everything is pad / concatenate / reshape shears -- no XLA gathers over (B, D, 128).
    """
    B, N, M = theta.shape
    D = N + M + 1
    L = LANES
    f32 = jnp.float32
    neg = jnp.float32(NEG)

    # ---- theta / a0: row-shear; row i of the extended matrix lands at d = i .. i+M --
    W_old = D + 1                 # the shear consumes one extra column per row

    def shear(rows):              # rows: (B, N+1, M+1) -> (B, L, D), row i shifted by i
        rows = jnp.pad(rows, ((0, 0), (0, L - (N + 1)), (0, W_old - (M + 1))))
        return rows.reshape(B, L * W_old)[:, :L * D].reshape(B, L, D)

    top_m = jnp.concatenate(      # row 0 = [0, NEG x M]  (top-row boundary disables m/x)
        [jnp.zeros((B, 1, 1), f32), jnp.full((B, 1, M), neg, f32)], axis=2)
    theta_rows = jnp.concatenate(
        [top_m,
         jnp.concatenate([jnp.full((B, N, 1), neg, f32), theta], axis=2)], axis=1)
    a0_rows = jnp.concatenate(
        [top_m,
         jnp.concatenate([A[:, 1, :, 0:1], A[:, 0]], axis=2)], axis=1)
    theta_li = shear(theta_rows)                               # (B, L, D)
    a0_li = shear(a0_rows)                                     # (B, L, D)

    # ---- ay = A[1, (i-j) % N, 0]: periodic broadcast + reshape (shift of 2 per row) --
    g = A[:, 1, :, 0]                                          # (B, N)
    W2 = _round_up(D + 2, N)                                   # multiple of N, >= D + 2
    period = jnp.concatenate([g[:, :1], g[:, :0:-1]], axis=1)  # period[t] = g[(-t) % N]
    base = jnp.tile(period, (1, W2 // N))                      # (B, W2)
    ay_li = (jnp.broadcast_to(base[:, None, :], (B, L, W2))
             .reshape(B, L * W2)[:, :L * (W2 - 2)]
             .reshape(B, L, W2 - 2)[:, :, :D])                 # ay[b,i,d] = g[(2i-d)%N]
    # left-column boundary (lane i == diag d): disable the y-arg.
    diag_mask = np.zeros((L, D), bool)
    diag_mask[np.arange(1, N + 1), np.arange(1, N + 1)] = True
    ay_li = jnp.where(jnp.asarray(diag_mask)[None], neg, ay_li)
    # top-row boundary (lane 0, d=1..M): y-arg carries the row-0 gap extension.
    ay_li = ay_li.at[:, 0, 1:M + 1].set(A[:, 0, 0, :])

    return jnp.stack([theta_li, a0_li, ay_li], axis=1)         # (B, 3, L, D)


def _choose_bblk(B, D):
    """Sublane batch block: widest block <= 32 that keeps >= 2 grid steps (when B > 8)
    and whose double-buffered stacked block fits the VMEM request cap."""
    b8 = _round_up(max(B, 1), SUBLANES)
    if b8 <= 2 * SUBLANES:
        bblk = SUBLANES                       # B <= 8 -> 1 step; 8 < B <= 16 -> 2 steps
    else:
        bblk = min(32, _round_up(b8 // 2, SUBLANES))
    while bblk > SUBLANES and (2 * 3 * D * bblk * LANES * 4 + (4 << 20)) > VMEM_CAP_BYTES:
        bblk -= SUBLANES
    return bblk


@jax.jit
def nw_forward_batched(theta, A):
    """Batched NW forward pass.  theta: (B, N, M), A: (B, 2, N, M) -> (B,) scores."""
    theta = jnp.asarray(theta, jnp.float32)
    A = jnp.asarray(A, jnp.float32)
    B, N, M = theta.shape
    assert A.shape == (B, 2, N, M)
    assert N + 1 <= LANES, "N too large for single-diagonal lane layout"
    # The numpy/numba A[1, i-j, 0] wrap-around indexing is only well defined for
    # M <= N + 1 -- make the precondition explicit.
    assert M <= N + 1, "NW gap indexing A[1, i-j, 0] requires M <= N + 1"
    D = N + M + 1
    L = LANES

    Bblk = _choose_bblk(B, D)
    Bp = _round_up(B, Bblk)
    G = Bp // Bblk
    if Bp != B:   # always pad to full 8-sublane vregs (including the B = 1 path)
        theta = jnp.pad(theta, ((0, Bp - B), (0, 0), (0, 0)))
        A = jnp.pad(A, ((0, Bp - B), (0, 0), (0, 0), (0, 0)))

    stacked = _build_skewed_stacked(theta, A)                  # (Bp, 3, L, D)
    # One contiguous HBM block per grid step: (G, 3, D, Bblk, L).
    stacked = stacked.reshape(G, Bblk, 3, L, D)
    stacked = jnp.transpose(stacked, (0, 2, 4, 1, 3))

    static_unroll = D <= STATIC_UNROLL_MAX_D
    # VMEM: the single stacked input, double-buffered, + output + headroom; capped.
    block_bytes = 3 * D * Bblk * L * 4
    vmem_limit = min(2 * block_bytes + 2 * Bblk * L * 4 + (4 << 20), VMEM_CAP_BYTES)

    out = pl.pallas_call(
        functools.partial(_nw_forward_kernel, N, M, D, static_unroll),
        out_shape=jax.ShapeDtypeStruct((Bp, L), jnp.float32),
        grid=(G,),
        in_specs=[pl.BlockSpec((pl.Squeezed(), 3, D, Bblk, L),
                               lambda g: (g, 0, 0, 0, 0))],
        out_specs=pl.BlockSpec((Bblk, L), lambda g: (g, 0)),
        compiler_params=pltpu.CompilerParams(
            dimension_semantics=("parallel",),
            vmem_limit_bytes=vmem_limit,
        ),
    )(stacked)

    # Vt = V[N, M] = W[N + M, lane N]
    return out[:B, N]


def nw_forward(theta, A):
    """Pallas implementation of NeedlemanWunschDecoder.forward (softmax operator).

    theta: (N, M) float32, A: (2, N, M) float32.  Returns scalar Vt (float32).
    """
    theta = jnp.asarray(theta, jnp.float32)
    A = jnp.asarray(A, jnp.float32)
    return nw_forward_batched(theta[None], A[None])[0]


def nw_reference(theta, A):
    """Pure NumPy (float64) transcription of _forward_pass_numba -- ground truth."""
    theta = np.asarray(theta, np.float64)
    A = np.asarray(A, np.float64)
    N, M = theta.shape
    V = np.zeros((N + 1, M + 1))
    for i in range(1, N + 1):
        V[i, 0] = V[i - 1, 0] + A[1, i - 1, 0]
    for j in range(1, M + 1):
        V[0, j] = V[0, j - 1] + A[0, 0, j - 1]
    for i in range(1, N + 1):
        for j in range(1, M + 1):
            args = np.array([
                A[0, i - 1, j - 1] + V[i - 1, j],        # x
                theta[i - 1, j - 1] + V[i - 1, j - 1],   # m
                A[1, i - j, 0] + V[i, j - 1],            # y (wrap-around, as in numba)
            ])
            mx = args.max()
            V[i, j] = mx + np.log(np.exp(args - mx).sum())
    return V[N, M]


if __name__ == "__main__":
    key = jax.random.PRNGKey(0)
    k1, k2, k3, k4, k5, k6 = jax.random.split(key, 6)

    # ---- single problem (module's forward signature); batch padded to 8 sublanes ----
    N, M = 8, 8
    theta = jax.random.normal(k1, (N, M), dtype=jnp.float32)
    A = jax.random.normal(k2, (2, N, M), dtype=jnp.float32) - 1.0  # gap penalties

    vt = nw_forward(theta, A)
    jax.block_until_ready(vt)
    ref = nw_reference(np.array(theta), np.array(A))
    assert np.allclose(float(vt), ref, rtol=1e-4, atol=1e-4), (float(vt), ref)

    # ---- batched path: padding + a 2-step parallel batch grid (both v7x TCs) --------
    B = 12
    theta_b = jax.random.normal(k3, (B, N, M), dtype=jnp.float32)
    A_b = jax.random.normal(k4, (B, 2, N, M), dtype=jnp.float32) - 1.0

    vt_b = nw_forward_batched(theta_b, A_b)
    jax.block_until_ready(vt_b)
    refs = np.array([nw_reference(np.array(theta_b[b]), np.array(A_b[b]))
                     for b in range(B)])
    assert np.allclose(np.array(vt_b), refs, rtol=1e-4, atol=1e-4), (np.array(vt_b), refs)

    # ---- rectangular, longer problem: exercises the fori_loop (non-unrolled) path ---
    N2, M2, B2 = 40, 33, 4
    theta_c = jax.random.normal(k5, (B2, N2, M2), dtype=jnp.float32)
    A_c = jax.random.normal(k6, (B2, 2, N2, M2), dtype=jnp.float32) - 1.0

    vt_c = nw_forward_batched(theta_c, A_c)
    jax.block_until_ready(vt_c)
    refs_c = np.array([nw_reference(np.array(theta_c[b]), np.array(A_c[b]))
                       for b in range(B2)])
    assert np.allclose(np.array(vt_c), refs_c, rtol=1e-4, atol=1e-3), (np.array(vt_c),
                                                                       refs_c)

    print("KERNEL_OK")
</pallas_src>

<mosaic_0001>
module attributes {stable_mosaic.version = 11 : i64} {
  func.func @_nw_forward_kernel(%arg0: i32, %arg1: memref<1x3x17x8x128xf32, #tpu.memory_space<vmem>>, %arg2: memref<8x128xf32, #tpu.memory_space<vmem>>) attributes {dimension_semantics = [#tpu.dimension_semantics<parallel>], iteration_bounds = array<i64: 1>, scalar_prefetch = 0 : i64, scratch_operands = 0 : i64, tpu.core_type = #tpu.core_type<tc>, window_params = [{transform_indices = @transform_0, window_bounds = array<i64: 1, 3, 17, 8, 128>}, {transform_indices = @transform_1, window_bounds = array<i64: 8, 128>}]} {
    %0 = tpu.iota {dimensions = array<i32: 1>} : vector<8x128xi32>
    %cst = arith.constant 0.000000e+00 : f32
    %1 = vector.broadcast %cst : f32 to vector<8x128xf32>
    %c0 = arith.constant 0 : index
    %c0_0 = arith.constant 0 : index
    %c1 = arith.constant 1 : index
    %c0_1 = arith.constant 0 : index
    %c0_2 = arith.constant 0 : index
    %2 = vector.load %arg1[%c0, %c0_0, %c1, %c0_1, %c0_2] : memref<1x3x17x8x128xf32, #tpu.memory_space<vmem>>, vector<1x1x1x8x128xf32>
    %3 = vector.shape_cast %2 : vector<1x1x1x8x128xf32> to vector<8x128xf32>
    %4 = arith.addf %3, %1 : vector<8x128xf32>
    %c0_3 = arith.constant 0 : index
    %c1_4 = arith.constant 1 : index
    %c1_5 = arith.constant 1 : index
    %c0_6 = arith.constant 0 : index
    %c0_7 = arith.constant 0 : index
    %5 = vector.load %arg1[%c0_3, %c1_4, %c1_5, %c0_6, %c0_7] : memref<1x3x17x8x128xf32, #tpu.memory_space<vmem>>, vector<1x1x1x8x128xf32>
    %6 = vector.shape_cast %5 : vector<1x1x1x8x128xf32> to vector<8x128xf32>
    %7 = arith.addf %6, %1 : vector<8x128xf32>
    %c0_8 = arith.constant 0 : index
    %c2 = arith.constant 2 : index
    %c1_9 = arith.constant 1 : index
    %c0_10 = arith.constant 0 : index
    %c0_11 = arith.constant 0 : index
    %8 = vector.load %arg1[%c0_8, %c2, %c1_9, %c0_10, %c0_11] : memref<1x3x17x8x128xf32, #tpu.memory_space<vmem>>, vector<1x1x1x8x128xf32>
    %9 = vector.shape_cast %8 : vector<1x1x1x8x128xf32> to vector<8x128xf32>
    %10 = arith.addf %9, %1 : vector<8x128xf32>
    %11 = arith.maximumf %7, %4 : vector<8x128xf32>
    %12 = arith.maximumf %11, %10 : vector<8x128xf32>
    %13 = arith.subf %7, %12 : vector<8x128xf32>
    %14 = math.exp %13 : vector<8x128xf32>
    %15 = arith.subf %4, %12 : vector<8x128xf32>
    %16 = math.exp %15 : vector<8x128xf32>
    %17 = arith.addf %14, %16 : vector<8x128xf32>
    %18 = arith.subf %10, %12 : vector<8x128xf32>
    %19 = math.exp %18 : vector<8x128xf32>
    %20 = arith.addf %17, %19 : vector<8x128xf32>
    %21 = math.log %20 : vector<8x128xf32>
    %22 = arith.addf %12, %21 : vector<8x128xf32>
    %c0_i32 = arith.constant 0 : i32
    %c-7_i32 = arith.constant -7 : i32
    %23 = arith.maxsi %c0_i32, %c-7_i32 : i32
    %c8_i32 = arith.constant 8 : i32
    %c1_i32 = arith.constant 1 : i32
    %24 = arith.minsi %c8_i32, %c1_i32 : i32
    %25 = vector.broadcast %23 : i32 to vector<8x128xi32>
    %26 = arith.cmpi sge, %0, %25 : vector<8x128xi32>
    %27 = vector.broadcast %24 : i32 to vector<8x128xi32>
    %28 = arith.cmpi sle, %0, %27 : vector<8x128xi32>
    %29 = arith.andi %26, %28 : vector<8x128xi1>
    %30 = arith.select %29, %22, %1 : vector<8x128xi1>, vector<8x128xf32>
    %c1_i32_12 = arith.constant 1 : i32
    %31 = tpu.dynamic_rotate %30 by %c1_i32_12 dim 1 : vector<8x128xf32>, i32 -> vector<8x128xf32>
    %c0_13 = arith.constant 0 : index
    %c0_14 = arith.constant 0 : index
    %c2_15 = arith.constant 2 : index
    %c0_16 = arith.constant 0 : index
    %c0_17 = arith.constant 0 : index
    %32 = vector.load %arg1[%c0_13, %c0_14, %c2_15, %c0_16, %c0_17] : memref<1x3x17x8x128xf32, #tpu.memory_space<vmem>>, vector<1x1x1x8x128xf32>
    %33 = vector.shape_cast %32 : vector<1x1x1x8x128xf32> to vector<8x128xf32>
    %34 = arith.addf %33, %1 : vector<8x128xf32>
    %c0_18 = arith.constant 0 : index
    %c1_19 = arith.constant 1 : index
    %c2_20 = arith.constant 2 : index
    %c0_21 = arith.constant 0 : index
    %c0_22 = arith.constant 0 : index
    %35 = vector.load %arg1[%c0_18, %c1_19, %c2_20, %c0_21, %c0_22] : memref<1x3x17x8x128xf32, #tpu.memory_space<vmem>>, vector<1x1x1x8x128xf32>
    %36 = vector.shape_cast %35 : vector<1x1x1x8x128xf32> to vector<8x128xf32>
    %37 = arith.addf %36, %31 : vector<8x128xf32>
    %c0_23 = arith.constant 0 : index
    %c2_24 = arith.constant 2 : index
    %c2_25 = arith.constant 2 : index
    %c0_26 = arith.constant 0 : index
    %c0_27 = arith.constant 0 : index
    %38 = vector.load %arg1[%c0_23, %c2_24, %c2_25, %c0_26, %c0_27] : memref<1x3x17x8x128xf32, #tpu.memory_space<vmem>>, vector<1x1x1x8x128xf32>
    %39 = vector.shape_cast %38 : vector<1x1x1x8x128xf32> to vector<8x128xf32>
    %40 = arith.addf %39, %30 : vector<8x128xf32>
    %41 = arith.maximumf %37, %34 : vector<8x128xf32>
    %42 = arith.maximumf %41, %40 : vector<8x128xf32>
    %43 = arith.subf %37, %42 : vector<8x128xf32>
    %44 = math.exp %43 : vector<8x128xf32>
    %45 = arith.subf %34, %42 : vector<8x128xf32>
    %46 = math.exp %45 : vector<8x128xf32>
    %47 = arith.addf %44, %46 : vector<8x128xf32>
    %48 = arith.subf %40, %42 : vector<8x128xf32>
    %49 = math.exp %48 : vector<8x128xf32>
    %50 = arith.addf %47, %49 : vector<8x128xf32>
    %51 = math.log %50 : vector<8x128xf32>
    %52 = arith.addf %42, %51 : vector<8x128xf32>
    %c0_i32_28 = arith.constant 0 : i32
    %c-6_i32 = arith.constant -6 : i32
    %53 = arith.maxsi %c0_i32_28, %c-6_i32 : i32
    %c8_i32_29 = arith.constant 8 : i32
    %c2_i32 = arith.constant 2 : i32
    %54 = arith.minsi %c8_i32_29, %c2_i32 : i32
    %55 = vector.broadcast %53 : i32 to vector<8x128xi32>
    %56 = arith.cmpi sge, %0, %55 : vector<8x128xi32>
    %57 = vector.broadcast %54 : i32 to vector<8x128xi32>
    %58 = arith.cmpi sle, %0, %57 : vector<8x128xi32>
    %59 = arith.andi %56, %58 : vector<8x128xi1>
    %60 = arith.select %59, %52, %1 : vector<8x128xi1>, vector<8x128xf32>
    %c1_i32_30 = arith.constant 1 : i32
    %61 = tpu.dynamic_rotate %60 by %c1_i32_30 dim 1 : vector<8x128xf32>, i32 -> vector<8x128xf32>
    %c0_31 = arith.constant 0 : index
    %c0_32 = arith.constant 0 : index
    %c3 = arith.constant 3 : index
    %c0_33 = arith.constant 0 : index
    %c0_34 = arith.constant 0 : index
    %62 = vector.load %arg1[%c0_31, %c0_32, %c3, %c0_33, %c0_34] : memref<1x3x17x8x128xf32, #tpu.memory_space<vmem>>, vector<1x1x1x8x128xf32>
    %63 = vector.shape_cast %62 : vector<1x1x1x8x128xf32> to vector<8x128xf32>
    %64 = arith.addf %63, %31 : vector<8x128xf32>
    %c0_35 = arith.constant 0 : index
    %c1_36 = arith.constant 1 : index
    %c3_37 = arith.constant 3 : index
    %c0_38 = arith.constant 0 : index
    %c0_39 = arith.constant 0 : index
    %65 = vector.load %arg1[%c0_35, %c1_36, %c3_37, %c0_38, %c0_39] : memref<1x3x17x8x128xf32, #tpu.memory_space<vmem>>, vector<1x1x1x8x128xf32>
    %66 = vector.shape_cast %65 : vector<1x1x1x8x128xf32> to vector<8x128xf32>
    %67 = arith.addf %66, %61 : vector<8x128xf32>
    %c0_40 = arith.constant 0 : index
    %c2_41 = arith.constant 2 : index
    %c3_42 = arith.constant 3 : index
    %c0_43 = arith.constant 0 : index
    %c0_44 = arith.constant 0 : index
    %68 = vector.load %arg1[%c0_40, %c2_41, %c3_42, %c0_43, %c0_44] : memref<1x3x17x8x128xf32, #tpu.memory_space<vmem>>, vector<1x1x1x8x128xf32>
    %69 = vector.shape_cast %68 : vector<1x1x1x8x128xf32> to vector<8x128xf32>
    %70 = arith.addf %69, %60 : vector<8x128xf32>
    %71 = arith.maximumf %67, %64 : vector<8x128xf32>
    %72 = arith.maximumf %71, %70 : vector<8x128xf32>
    %73 = arith.subf %67, %72 : vector<8x128xf32>
    %74 = math.exp %73 : vector<8x128xf32>
    %75 = arith.subf %64, %72 : vector<8x128xf32>
    %76 = math.exp %75 : vector<8x128xf32>
    %77 = arith.addf %74, %76 : vector<8x128xf32>
    %78 = arith.subf %70, %72 : vector<8x128xf32>
    %79 = math.exp %78 : vector<8x128xf32>
    %80 = arith.addf %77, %79 : vector<8x128xf32>
    %81 = math.log %80 : vector<8x128xf32>
    %82 = arith.addf %72, %81 : vector<8x128xf32>
    %c0_i32_45 = arith.constant 0 : i32
    %c-5_i32 = arith.constant -5 : i32
    %83 = arith.maxsi %c0_i32_45, %c-5_i32 : i32
    %c8_i32_46 = arith.constant 8 : i32
    %c3_i32 = arith.constant 3 : i32
    %84 = arith.minsi %c8_i32_46, %c3_i32 : i32
    %85 = vector.broadcast %83 : i32 to vector<8x128xi32>
    %86 = arith.cmpi sge, %0, %85 : vector<8x128xi32>
    %87 = vector.broadcast %84 : i32 to vector<8x128xi32>
    %88 = arith.cmpi sle, %0, %87 : vector<8x128xi32>
    %89 = arith.andi %86, %88 : vector<8x128xi1>
    %90 = arith.select %89, %82, %1 : vector<8x128xi1>, vector<8x128xf32>
    %c1_i32_47 = arith.constant 1 : i32
    %91 = tpu.dynamic_rotate %90 by %c1_i32_47 dim 1 : vector<8x128xf32>, i32 -> vector<8x128xf32>
    %c0_48 = arith.constant 0 : index
    %c0_49 = arith.constant 0 : index
    %c4 = arith.constant 4 : index
    %c0_50 = arith.constant 0 : index
    %c0_51 = arith.constant 0 : index
    %92 = vector.load %arg1[%c0_48, %c0_49, %c4, %c0_50, %c0_51] : memref<1x3x17x8x128xf32, #tpu.memory_space<vmem>>, vector<1x1x1x8x128xf32>
    %93 = vector.shape_cast %92 : vector<1x1x1x8x128xf32> to vector<8x128xf32>
    %94 = arith.addf %93, %61 : vector<8x128xf32>
    %c0_52 = arith.constant 0 : index
    %c1_53 = arith.constant 1 : index
    %c4_54 = arith.constant 4 : index
    %c0_55 = arith.constant 0 : index
    %c0_56 = arith.constant 0 : index
    %95 = vector.load %arg1[%c0_52, %c1_53, %c4_54, %c0_55, %c0_56] : memref<1x3x17x8x128xf32, #tpu.memory_space<vmem>>, vector<1x1x1x8x128xf32>
    %96 = vector.shape_cast %95 : vector<1x1x1x8x128xf32> to vector<8x128xf32>
    %97 = arith.addf %96, %91 : vector<8x128xf32>
    %c0_57 = arith.constant 0 : index
    %c2_58 = arith.constant 2 : index
    %c4_59 = arith.constant 4 : index
    %c0_60 = arith.constant 0 : index
    %c0_61 = arith.constant 0 : index
    %98 = vector.load %arg1[%c0_57, %c2_58, %c4_59, %c0_60, %c0_61] : memref<1x3x17x8x128xf32, #tpu.memory_space<vmem>>, vector<1x1x1x8x128xf32>
    %99 = vector.shape_cast %98 : vector<1x1x1x8x128xf32> to vector<8x128xf32>
    %100 = arith.addf %99, %90 : vector<8x128xf32>
    %101 = arith.maximumf %97, %94 : vector<8x128xf32>
    %102 = arith.maximumf %101, %100 : vector<8x128xf32>
    %103 = arith.subf %97, %102 : vector<8x128xf32>
    %104 = math.exp %103 : vector<8x128xf32>
    %105 = arith.subf %94, %102 : vector<8x128xf32>
    %106 = math.exp %105 : vector<8x128xf32>
    %107 = arith.addf %104, %106 : vector<8x128xf32>
    %108 = arith.subf %100, %102 : vector<8x128xf32>
    %109 = math.exp %108 : vector<8x128xf32>
    %110 = arith.addf %107, %109 : vector<8x128xf32>
    %111 = math.log %110 : vector<8x128xf32>
    %112 = arith.addf %102, %111 : vector<8x128xf32>
    %c0_i32_62 = arith.constant 0 : i32
    %c-4_i32 = arith.constant -4 : i32
    %113 = arith.maxsi %c0_i32_62, %c-4_i32 : i32
    %c8_i32_63 = arith.constant 8 : i32
    %c4_i32 = arith.constant 4 : i32
    %114 = arith.minsi %c8_i32_63, %c4_i32 : i32
    %115 = vector.broadcast %113 : i32 to vector<8x128xi32>
    %116 = arith.cmpi sge, %0, %115 : vector<8x128xi32>
    %117 = vector.broadcast %114 : i32 to vector<8x128xi32>
    %118 = arith.cmpi sle, %0, %117 : vector<8x128xi32>
    %119 = arith.andi %116, %118 : vector<8x128xi1>
    %120 = arith.select %119, %112, %1 : vector<8x128xi1>, vector<8x128xf32>
    %c1_i32_64 = arith.constant 1 : i32
    %121 = tpu.dynamic_rotate %120 by %c1_i32_64 dim 1 : vector<8x128xf32>, i32 -> vector<8x128xf32>
    %c0_65 = arith.constant 0 : index
    %c0_66 = arith.constant 0 : index
    %c5 = arith.constant 5 : index
    %c0_67 = arith.constant 0 : index
    %c0_68 = arith.constant 0 : index
    %122 = vector.load %arg1[%c0_65, %c0_66, %c5, %c0_67, %c0_68] : memref<1x3x17x8x128xf32, #tpu.memory_space<vmem>>, vector<1x1x1x8x128xf32>
    %123 = vector.shape_cast %122 : vector<1x1x1x8x128xf32> to vector<8x128xf32>
    %124 = arith.addf %123, %91 : vector<8x128xf32>
    %c0_69 = arith.constant 0 : index
    %c1_70 = arith.constant 1 : index
    %c5_71 = arith.constant 5 : index
    %c0_72 = arith.constant 0 : index
    %c0_73 = arith.constant 0 : index
    %125 = vector.load %arg1[%c0_69, %c1_70, %c5_71, %c0_72, %c0_73] : memref<1x3x17x8x128xf32, #tpu.memory_space<vmem>>, vector<1x1x1x8x128xf32>
    %126 = vector.shape_cast %125 : vector<1x1x1x8x128xf32> to vector<8x128xf32>
    %127 = arith.addf %126, %121 : vector<8x128xf32>
    %c0_74 = arith.constant 0 : index
    %c2_75 = arith.constant 2 : index
    %c5_76 = arith.constant 5 : index
    %c0_77 = arith.constant 0 : index
    %c0_78 = arith.constant 0 : index
    %128 = vector.load %arg1[%c0_74, %c2_75, %c5_76, %c0_77, %c0_78] : memref<1x3x17x8x128xf32, #tpu.memory_space<vmem>>, vector<1x1x1x8x128xf32>
    %129 = vector.shape_cast %128 : vector<1x1x1x8x128xf32> to vector<8x128xf32>
    %130 = arith.addf %129, %120 : vector<8x128xf32>
    %131 = arith.maximumf %127, %124 : vector<8x128xf32>
    %132 = arith.maximumf %131, %130 : vector<8x128xf32>
    %133 = arith.subf %127, %132 : vector<8x128xf32>
    %134 = math.exp %133 : vector<8x128xf32>
    %135 = arith.subf %124, %132 : vector<8x128xf32>
    %136 = math.exp %135 : vector<8x128xf32>
    %137 = arith.addf %134, %136 : vector<8x128xf32>
    %138 = arith.subf %130, %132 : vector<8x128xf32>
    %139 = math.exp %138 : vector<8x128xf32>
    %140 = arith.addf %137, %139 : vector<8x128xf32>
    %141 = math.log %140 : vector<8x128xf32>
    %142 = arith.addf %132, %141 : vector<8x128xf32>
    %c0_i32_79 = arith.constant 0 : i32
    %c-3_i32 = arith.constant -3 : i32
    %143 = arith.maxsi %c0_i32_79, %c-3_i32 : i32
    %c8_i32_80 = arith.constant 8 : i32
    %c5_i32 = arith.constant 5 : i32
    %144 = arith.minsi %c8_i32_80, %c5_i32 : i32
    %145 = vector.broadcast %143 : i32 to vector<8x128xi32>
    %146 = arith.cmpi sge, %0, %145 : vector<8x128xi32>
    %147 = vector.broadcast %144 : i32 to vector<8x128xi32>
    %148 = arith.cmpi sle, %0, %147 : vector<8x128xi32>
    %149 = arith.andi %146, %148 : vector<8x128xi1>
    %150 = arith.select %149, %142, %1 : vector<8x128xi1>, vector<8x128xf32>
    %c1_i32_81 = arith.constant 1 : i32
    %151 = tpu.dynamic_rotate %150 by %c1_i32_81 dim 1 : vector<8x128xf32>, i32 -> vector<8x128xf32>
    %c0_82 = arith.constant 0 : index
    %c0_83 = arith.constant 0 : index
    %c6 = arith.constant 6 : index
    %c0_84 = arith.constant 0 : index
    %c0_85 = arith.constant 0 : index
    %152 = vector.load %arg1[%c0_82, %c0_83, %c6, %c0_84, %c0_85] : memref<1x3x17x8x128xf32, #tpu.memory_space<vmem>>, vector<1x1x1x8x128xf32>
    %153 = vector.shape_cast %152 : vector<1x1x1x8x128xf32> to vector<8x128xf32>
    %154 = arith.addf %153, %121 : vector<8x128xf32>
    %c0_86 = arith.constant 0 : index
    %c1_87 = arith.constant 1 : index
    %c6_88 = arith.constant 6 : index
    %c0_89 = arith.constant 0 : index
    %c0_90 = arith.constant 0 : index
    %155 = vector.load %arg1[%c0_86, %c1_87, %c6_88, %c0_89, %c0_90] : memref<1x3x17x8x128xf32, #tpu.memory_space<vmem>>, vector<1x1x1x8x128xf32>
    %156 = vector.shape_cast %155 : vector<1x1x1x8x128xf32> to vector<8x128xf32>
    %157 = arith.addf %156, %151 : vector<8x128xf32>
    %c0_91 = arith.constant 0 : index
    %c2_92 = arith.constant 2 : index
    %c6_93 = arith.constant 6 : index
    %c0_94 = arith.constant 0 : index
    %c0_95 = arith.constant 0 : index
    %158 = vector.load %arg1[%c0_91, %c2_92, %c6_93, %c0_94, %c0_95] : memref<1x3x17x8x128xf32, #tpu.memory_space<vmem>>, vector<1x1x1x8x128xf32>
    %159 = vector.shape_cast %158 : vector<1x1x1x8x128xf32> to vector<8x128xf32>
    %160 = arith.addf %159, %150 : vector<8x128xf32>
    %161 = arith.maximumf %157, %154 : vector<8x128xf32>
    %162 = arith.maximumf %161, %160 : vector<8x128xf32>
    %163 = arith.subf %157, %162 : vector<8x128xf32>
    %164 = math.exp %163 : vector<8x128xf32>
    %165 = arith.subf %154, %162 : vector<8x128xf32>
    %166 = math.exp %165 : vector<8x128xf32>
    %167 = arith.addf %164, %166 : vector<8x128xf32>
    %168 = arith.subf %160, %162 : vector<8x128xf32>
    %169 = math.exp %168 : vector<8x128xf32>
    %170 = arith.addf %167, %169 : vector<8x128xf32>
    %171 = math.log %170 : vector<8x128xf32>
    %172 = arith.addf %162, %171 : vector<8x128xf32>
    %c0_i32_96 = arith.constant 0 : i32
    %c-2_i32 = arith.constant -2 : i32
    %173 = arith.maxsi %c0_i32_96, %c-2_i32 : i32
    %c8_i32_97 = arith.constant 8 : i32
    %c6_i32 = arith.constant 6 : i32
    %174 = arith.minsi %c8_i32_97, %c6_i32 : i32
    %175 = vector.broadcast %173 : i32 to vector<8x128xi32>
    %176 = arith.cmpi sge, %0, %175 : vector<8x128xi32>
    %177 = vector.broadcast %174 : i32 to vector<8x128xi32>
    %178 = arith.cmpi sle, %0, %177 : vector<8x128xi32>
    %179 = arith.andi %176, %178 : vector<8x128xi1>
    %180 = arith.select %179, %172, %1 : vector<8x128xi1>, vector<8x128xf32>
    %c1_i32_98 = arith.constant 1 : i32
    %181 = tpu.dynamic_rotate %180 by %c1_i32_98 dim 1 : vector<8x128xf32>, i32 -> vector<8x128xf32>
    %c0_99 = arith.constant 0 : index
    %c0_100 = arith.constant 0 : index
    %c7 = arith.constant 7 : index
    %c0_101 = arith.constant 0 : index
    %c0_102 = arith.constant 0 : index
    %182 = vector.load %arg1[%c0_99, %c0_100, %c7, %c0_101, %c0_102] : memref<1x3x17x8x128xf32, #tpu.memory_space<vmem>>, vector<1x1x1x8x128xf32>
    %183 = vector.shape_cast %182 : vector<1x1x1x8x128xf32> to vector<8x128xf32>
    %184 = arith.addf %183, %151 : vector<8x128xf32>
    %c0_103 = arith.constant 0 : index
    %c1_104 = arith.constant 1 : index
    %c7_105 = arith.constant 7 : index
    %c0_106 = arith.constant 0 : index
    %c0_107 = arith.constant 0 : index
    %185 = vector.load %arg1[%c0_103, %c1_104, %c7_105, %c0_106, %c0_107] : memref<1x3x17x8x128xf32, #tpu.memory_space<vmem>>, vector<1x1x1x8x128xf32>
    %186 = vector.shape_cast %185 : vector<1x1x1x8x128xf32> to vector<8x128xf32>
    %187 = arith.addf %186, %181 : vector<8x128xf32>
    %c0_108 = arith.constant 0 : index
    %c2_109 = arith.constant 2 : index
    %c7_110 = arith.constant 7 : index
    %c0_111 = arith.constant 0 : index
    %c0_112 = arith.constant 0 : index
    %188 = vector.load %arg1[%c0_108, %c2_109, %c7_110, %c0_111, %c0_112] : memref<1x3x17x8x128xf32, #tpu.memory_space<vmem>>, vector<1x1x1x8x128xf32>
    %189 = vector.shape_cast %188 : vector<1x1x1x8x128xf32> to vector<8x128xf32>
    %190 = arith.addf %189, %180 : vector<8x128xf32>
    %191 = arith.maximumf %187, %184 : vector<8x128xf32>
    %192 = arith.maximumf %191, %190 : vector<8x128xf32>
    %193 = arith.subf %187, %192 : vector<8x128xf32>
    %194 = math.exp %193 : vector<8x128xf32>
    %195 = arith.subf %184, %192 : vector<8x128xf32>
    %196 = math.exp %195 : vector<8x128xf32>
    %197 = arith.addf %194, %196 : vector<8x128xf32>
    %198 = arith.subf %190, %192 : vector<8x128xf32>
    %199 = math.exp %198 : vector<8x128xf32>
    %200 = arith.addf %197, %199 : vector<8x128xf32>
    %201 = math.log %200 : vector<8x128xf32>
    %202 = arith.addf %192, %201 : vector<8x128xf32>
    %c0_i32_113 = arith.constant 0 : i32
    %c-1_i32 = arith.constant -1 : i32
    %203 = arith.maxsi %c0_i32_113, %c-1_i32 : i32
    %c8_i32_114 = arith.constant 8 : i32
    %c7_i32 = arith.constant 7 : i32
    %204 = arith.minsi %c8_i32_114, %c7_i32 : i32
    %205 = vector.broadcast %203 : i32 to vector<8x128xi32>
    %206 = arith.cmpi sge, %0, %205 : vector<8x128xi32>
    %207 = vector.broadcast %204 : i32 to vector<8x128xi32>
    %208 = arith.cmpi sle, %0, %207 : vector<8x128xi32>
    %209 = arith.andi %206, %208 : vector<8x128xi1>
    %210 = arith.select %209, %202, %1 : vector<8x128xi1>, vector<8x128xf32>
    %c1_i32_115 = arith.constant 1 : i32
    %211 = tpu.dynamic_rotate %210 by %c1_i32_115 dim 1 : vector<8x128xf32>, i32 -> vector<8x128xf32>
    %c0_116 = arith.constant 0 : index
    %c0_117 = arith.constant 0 : index
    %c8 = arith.constant 8 : index
    %c0_118 = arith.constant 0 : index
    %c0_119 = arith.constant 0 : index
    %212 = vector.load %arg1[%c0_116, %c0_117, %c8, %c0_118, %c0_119] : memref<1x3x17x8x128xf32, #tpu.memory_space<vmem>>, vector<1x1x1x8x128xf32>
    %213 = vector.shape_cast %212 : vector<1x1x1x8x128xf32> to vector<8x128xf32>
    %214 = arith.addf %213, %181 : vector<8x128xf32>
    %c0_120 = arith.constant 0 : index
    %c1_121 = arith.constant 1 : index
    %c8_122 = arith.constant 8 : index
    %c0_123 = arith.constant 0 : index
    %c0_124 = arith.constant 0 : index
    %215 = vector.load %arg1[%c0_120, %c1_121, %c8_122, %c0_123, %c0_124] : memref<1x3x17x8x128xf32, #tpu.memory_space<vmem>>, vector<1x1x1x8x128xf32>
    %216 = vector.shape_cast %215 : vector<1x1x1x8x128xf32> to vector<8x128xf32>
    %217 = arith.addf %216, %211 : vector<8x128xf32>
    %c0_125 = arith.constant 0 : index
    %c2_126 = arith.constant 2 : index
    %c8_127 = arith.constant 8 : index
    %c0_128 = arith.constant 0 : index
    %c0_129 = arith.constant 0 : index
    %218 = vector.load %arg1[%c0_125, %c2_126, %c8_127, %c0_128, %c0_129] : memref<1x3x17x8x128xf32, #tpu.memory_space<vmem>>, vector<1x1x1x8x128xf32>
    %219 = vector.shape_cast %218 : vector<1x1x1x8x128xf32> to vector<8x128xf32>
    %220 = arith.addf %219, %210 : vector<8x128xf32>
    %221 = arith.maximumf %217, %214 : vector<8x128xf32>
    %222 = arith.maximumf %221, %220 : vector<8x128xf32>
    %223 = arith.subf %217, %222 : vector<8x128xf32>
    %224 = math.exp %223 : vector<8x128xf32>
    %225 = arith.subf %214, %222 : vector<8x128xf32>
    %226 = math.exp %225 : vector<8x128xf32>
    %227 = arith.addf %224, %226 : vector<8x128xf32>
    %228 = arith.subf %220, %222 : vector<8x128xf32>
    %229 = math.exp %228 : vector<8x128xf32>
    %230 = arith.addf %227, %229 : vector<8x128xf32>
    %231 = math.log %230 : vector<8x128xf32>
    %232 = arith.addf %222, %231 : vector<8x128xf32>
    %c0_i32_130 = arith.constant 0 : i32
    %c0_i32_131 = arith.constant 0 : i32
    %233 = arith.maxsi %c0_i32_130, %c0_i32_131 : i32
    %c8_i32_132 = arith.constant 8 : i32
    %c8_i32_133 = arith.constant 8 : i32
    %234 = arith.minsi %c8_i32_132, %c8_i32_133 : i32
    %235 = vector.broadcast %233 : i32 to vector<8x128xi32>
    %236 = arith.cmpi sge, %0, %235 : vector<8x128xi32>
    %237 = vector.broadcast %234 : i32 to vector<8x128xi32>
    %238 = arith.cmpi sle, %0, %237 : vector<8x128xi32>
    %239 = arith.andi %236, %238 : vector<8x128xi1>
    %240 = arith.select %239, %232, %1 : vector<8x128xi1>, vector<8x128xf32>
    %c1_i32_134 = arith.constant 1 : i32
    %241 = tpu.dynamic_rotate %240 by %c1_i32_134 dim 1 : vector<8x128xf32>, i32 -> vector<8x128xf32>
    %c0_135 = arith.constant 0 : index
    %c0_136 = arith.constant 0 : index
    %c9 = arith.constant 9 : index
    %c0_137 = arith.constant 0 : index
    %c0_138 = arith.constant 0 : index
    %242 = vector.load %arg1[%c0_135, %c0_136, %c9, %c0_137, %c0_138] : memref<1x3x17x8x128xf32, #tpu.memory_space<vmem>>, vector<1x1x1x8x128xf32>
    %243 = vector.shape_cast %242 : vector<1x1x1x8x128xf32> to vector<8x128xf32>
    %244 = arith.addf %243, %211 : vector<8x128xf32>
    %c0_139 = arith.constant 0 : index
    %c1_140 = arith.constant 1 : index
    %c9_141 = arith.constant 9 : index
    %c0_142 = arith.constant 0 : index
    %c0_143 = arith.constant 0 : index
    %245 = vector.load %arg1[%c0_139, %c1_140, %c9_141, %c0_142, %c0_143] : memref<1x3x17x8x128xf32, #tpu.memory_space<vmem>>, vector<1x1x1x8x128xf32>
    %246 = vector.shape_cast %245 : vector<1x1x1x8x128xf32> to vector<8x128xf32>
    %247 = arith.addf %246, %241 : vector<8x128xf32>
    %c0_144 = arith.constant 0 : index
    %c2_145 = arith.constant 2 : index
    %c9_146 = arith.constant 9 : index
    %c0_147 = arith.constant 0 : index
    %c0_148 = arith.constant 0 : index
    %248 = vector.load %arg1[%c0_144, %c2_145, %c9_146, %c0_147, %c0_148] : memref<1x3x17x8x128xf32, #tpu.memory_space<vmem>>, vector<1x1x1x8x128xf32>
    %249 = vector.shape_cast %248 : vector<1x1x1x8x128xf32> to vector<8x128xf32>
    %250 = arith.addf %249, %240 : vector<8x128xf32>
    %251 = arith.maximumf %247, %244 : vector<8x128xf32>
    %252 = arith.maximumf %251, %250 : vector<8x128xf32>
    %253 = arith.subf %247, %252 : vector<8x128xf32>
    %254 = math.exp %253 : vector<8x128xf32>
    %255 = arith.subf %244, %252 : vector<8x128xf32>
    %256 = math.exp %255 : vector<8x128xf32>
    %257 = arith.addf %254, %256 : vector<8x128xf32>
    %258 = arith.subf %250, %252 : vector<8x128xf32>
    %259 = math.exp %258 : vector<8x128xf32>
    %260 = arith.addf %257, %259 : vector<8x128xf32>
    %261 = math.log %260 : vector<8x128xf32>
    %262 = arith.addf %252, %261 : vector<8x128xf32>
    %c0_i32_149 = arith.constant 0 : i32
    %c1_i32_150 = arith.constant 1 : i32
    %263 = arith.maxsi %c0_i32_149, %c1_i32_150 : i32
    %c8_i32_151 = arith.constant 8 : i32
    %c9_i32 = arith.constant 9 : i32
    %264 = arith.minsi %c8_i32_151, %c9_i32 : i32
    %265 = vector.broadcast %263 : i32 to vector<8x128xi32>
    %266 = arith.cmpi sge, %0, %265 : vector<8x128xi32>
    %267 = vector.broadcast %264 : i32 to vector<8x128xi32>
    %268 = arith.cmpi sle, %0, %267 : vector<8x128xi32>
    %269 = arith.andi %266, %268 : vector<8x128xi1>
    %270 = arith.select %269, %262, %1 : vector<8x128xi1>, vector<8x128xf32>
    %c1_i32_152 = arith.constant 1 : i32
    %271 = tpu.dynamic_rotate %270 by %c1_i32_152 dim 1 : vector<8x128xf32>, i32 -> vector<8x128xf32>
    %c0_153 = arith.constant 0 : index
    %c0_154 = arith.constant 0 : index
    %c10 = arith.constant 10 : index
    %c0_155 = arith.constant 0 : index
    %c0_156 = arith.constant 0 : index
    %272 = vector.load %arg1[%c0_153, %c0_154, %c10, %c0_155, %c0_156] : memref<1x3x17x8x128xf32, #tpu.memory_space<vmem>>, vector<1x1x1x8x128xf32>
    %273 = vector.shape_cast %272 : vector<1x1x1x8x128xf32> to vector<8x128xf32>
    %274 = arith.addf %273, %241 : vector<8x128xf32>
    %c0_157 = arith.constant 0 : index
    %c1_158 = arith.constant 1 : index
    %c10_159 = arith.constant 10 : index
    %c0_160 = arith.constant 0 : index
    %c0_161 = arith.constant 0 : index
    %275 = vector.load %arg1[%c0_157, %c1_158, %c10_159, %c0_160, %c0_161] : memref<1x3x17x8x128xf32, #tpu.memory_space<vmem>>, vector<1x1x1x8x128xf32>
    %276 = vector.shape_cast %275 : vector<1x1x1x8x128xf32> to vector<8x128xf32>
    %277 = arith.addf %276, %271 : vector<8x128xf32>
    %c0_162 = arith.constant 0 : index
    %c2_163 = arith.constant 2 : index
    %c10_164 = arith.constant 10 : index
    %c0_165 = arith.constant 0 : index
    %c0_166 = arith.constant 0 : index
    %278 = vector.load %arg1[%c0_162, %c2_163, %c10_164, %c0_165, %c0_166] : memref<1x3x17x8x128xf32, #tpu.memory_space<vmem>>, vector<1x1x1x8x128xf32>
    %279 = vector.shape_cast %278 : vector<1x1x1x8x128xf32> to vector<8x128xf32>
    %280 = arith.addf %279, %270 : vector<8x128xf32>
    %281 = arith.maximumf %277, %274 : vector<8x128xf32>
    %282 = arith.maximumf %281, %280 : vector<8x128xf32>
    %283 = arith.subf %277, %282 : vector<8x128xf32>
    %284 = math.exp %283 : vector<8x128xf32>
    %285 = arith.subf %274, %282 : vector<8x128xf32>
    %286 = math.exp %285 : vector<8x128xf32>
    %287 = arith.addf %284, %286 : vector<8x128xf32>
    %288 = arith.subf %280, %282 : vector<8x128xf32>
    %289 = math.exp %288 : vector<8x128xf32>
    %290 = arith.addf %287, %289 : vector<8x128xf32>
    %291 = math.log %290 : vector<8x128xf32>
    %292 = arith.addf %282, %291 : vector<8x128xf32>
    %c0_i32_167 = arith.constant 0 : i32
    %c2_i32_168 = arith.constant 2 : i32
    %293 = arith.maxsi %c0_i32_167, %c2_i32_168 : i32
    %c8_i32_169 = arith.constant 8 : i32
    %c10_i32 = arith.constant 10 : i32
    %294 = arith.minsi %c8_i32_169, %c10_i32 : i32
    %295 = vector.broadcast %293 : i32 to vector<8x128xi32>
    %296 = arith.cmpi sge, %0, %295 : vector<8x128xi32>
    %297 = vector.broadcast %294 : i32 to vector<8x128xi32>
    %298 = arith.cmpi sle, %0, %297 : vector<8x128xi32>
    %299 = arith.andi %296, %298 : vector<8x128xi1>
    %300 = arith.select %299, %292, %1 : vector<8x128xi1>, vector<8x128xf32>
    %c1_i32_170 = arith.constant 1 : i32
    %301 = tpu.dynamic_rotate %300 by %c1_i32_170 dim 1 : vector<8x128xf32>, i32 -> vector<8x128xf32>
    %c0_171 = arith.constant 0 : index
    %c0_172 = arith.constant 0 : index
    %c11 = arith.constant 11 : index
    %c0_173 = arith.constant 0 : index
    %c0_174 = arith.constant 0 : index
    %302 = vector.load %arg1[%c0_171, %c0_172, %c11, %c0_173, %c0_174] : memref<1x3x17x8x128xf32, #tpu.memory_space<vmem>>, vector<1x1x1x8x128xf32>
    %303 = vector.shape_cast %302 : vector<1x1x1x8x128xf32> to vector<8x128xf32>
    %304 = arith.addf %303, %271 : vector<8x128xf32>
    %c0_175 = arith.constant 0 : index
    %c1_176 = arith.constant 1 : index
    %c11_177 = arith.constant 11 : index
    %c0_178 = arith.constant 0 : index
    %c0_179 = arith.constant 0 : index
    %305 = vector.load %arg1[%c0_175, %c1_176, %c11_177, %c0_178, %c0_179] : memref<1x3x17x8x128xf32, #tpu.memory_space<vmem>>, vector<1x1x1x8x128xf32>
    %306 = vector.shape_cast %305 : vector<1x1x1x8x128xf32> to vector<8x128xf32>
    %307 = arith.addf %306, %301 : vector<8x128xf32>
    %c0_180 = arith.constant 0 : index
    %c2_181 = arith.constant 2 : index
    %c11_182 = arith.constant 11 : index
    %c0_183 = arith.constant 0 : index
    %c0_184 = arith.constant 0 : index
    %308 = vector.load %arg1[%c0_180, %c2_181, %c11_182, %c0_183, %c0_184] : memref<1x3x17x8x128xf32, #tpu.memory_space<vmem>>, vector<1x1x1x8x128xf32>
    %309 = vector.shape_cast %308 : vector<1x1x1x8x128xf32> to vector<8x128xf32>
    %310 = arith.addf %309, %300 : vector<8x128xf32>
    %311 = arith.maximumf %307, %304 : vector<8x128xf32>
    %312 = arith.maximumf %311, %310 : vector<8x128xf32>
    %313 = arith.subf %307, %312 : vector<8x128xf32>
    %314 = math.exp %313 : vector<8x128xf32>
    %315 = arith.subf %304, %312 : vector<8x128xf32>
    %316 = math.exp %315 : vector<8x128xf32>
    %317 = arith.addf %314, %316 : vector<8x128xf32>
    %318 = arith.subf %310, %312 : vector<8x128xf32>
    %319 = math.exp %318 : vector<8x128xf32>
    %320 = arith.addf %317, %319 : vector<8x128xf32>
    %321 = math.log %320 : vector<8x128xf32>
    %322 = arith.addf %312, %321 : vector<8x128xf32>
    %c0_i32_185 = arith.constant 0 : i32
    %c3_i32_186 = arith.constant 3 : i32
    %323 = arith.maxsi %c0_i32_185, %c3_i32_186 : i32
    %c8_i32_187 = arith.constant 8 : i32
    %c11_i32 = arith.constant 11 : i32
    %324 = arith.minsi %c8_i32_187, %c11_i32 : i32
    %325 = vector.broadcast %323 : i32 to vector<8x128xi32>
    %326 = arith.cmpi sge, %0, %325 : vector<8x128xi32>
    %327 = vector.broadcast %324 : i32 to vector<8x128xi32>
    %328 = arith.cmpi sle, %0, %327 : vector<8x128xi32>
    %329 = arith.andi %326, %328 : vector<8x128xi1>
    %330 = arith.select %329, %322, %1 : vector<8x128xi1>, vector<8x128xf32>
    %c1_i32_188 = arith.constant 1 : i32
    %331 = tpu.dynamic_rotate %330 by %c1_i32_188 dim 1 : vector<8x128xf32>, i32 -> vector<8x128xf32>
    %c0_189 = arith.constant 0 : index
    %c0_190 = arith.constant 0 : index
    %c12 = arith.constant 12 : index
    %c0_191 = arith.constant 0 : index
    %c0_192 = arith.constant 0 : index
    %332 = vector.load %arg1[%c0_189, %c0_190, %c12, %c0_191, %c0_192] : memref<1x3x17x8x128xf32, #tpu.memory_space<vmem>>, vector<1x1x1x8x128xf32>
    %333 = vector.shape_cast %332 : vector<1x1x1x8x128xf32> to vector<8x128xf32>
    %334 = arith.addf %333, %301 : vector<8x128xf32>
    %c0_193 = arith.constant 0 : index
    %c1_194 = arith.constant 1 : index
    %c12_195 = arith.constant 12 : index
    %c0_196 = arith.constant 0 : index
    %c0_197 = arith.constant 0 : index
    %335 = vector.load %arg1[%c0_193, %c1_194, %c12_195, %c0_196, %c0_197] : memref<1x3x17x8x128xf32, #tpu.memory_space<vmem>>, vector<1x1x1x8x128xf32>
    %336 = vector.shape_cast %335 : vector<1x1x1x8x128xf32> to vector<8x128xf32>
    %337 = arith.addf %336, %331 : vector<8x128xf32>
    %c0_198 = arith.constant 0 : index
    %c2_199 = arith.constant 2 : index
    %c12_200 = arith.constant 12 : index
    %c0_201 = arith.constant 0 : index
    %c0_202 = arith.constant 0 : index
    %338 = vector.load %arg1[%c0_198, %c2_199, %c12_200, %c0_201, %c0_202] : memref<1x3x17x8x128xf32, #tpu.memory_space<vmem>>, vector<1x1x1x8x128xf32>
    %339 = vector.shape_cast %338 : vector<1x1x1x8x128xf32> to vector<8x128xf32>
    %340 = arith.addf %339, %330 : vector<8x128xf32>
    %341 = arith.maximumf %337, %334 : vector<8x128xf32>
    %342 = arith.maximumf %341, %340 : vector<8x128xf32>
    %343 = arith.subf %337, %342 : vector<8x128xf32>
    %344 = math.exp %343 : vector<8x128xf32>
    %345 = arith.subf %334, %342 : vector<8x128xf32>
    %346 = math.exp %345 : vector<8x128xf32>
    %347 = arith.addf %344, %346 : vector<8x128xf32>
    %348 = arith.subf %340, %342 : vector<8x128xf32>
    %349 = math.exp %348 : vector<8x128xf32>
    %350 = arith.addf %347, %349 : vector<8x128xf32>
    %351 = math.log %350 : vector<8x128xf32>
    %352 = arith.addf %342, %351 : vector<8x128xf32>
    %c0_i32_203 = arith.constant 0 : i32
    %c4_i32_204 = arith.constant 4 : i32
    %353 = arith.maxsi %c0_i32_203, %c4_i32_204 : i32
    %c8_i32_205 = arith.constant 8 : i32
    %c12_i32 = arith.constant 12 : i32
    %354 = arith.minsi %c8_i32_205, %c12_i32 : i32
    %355 = vector.broadcast %353 : i32 to vector<8x128xi32>
    %356 = arith.cmpi sge, %0, %355 : vector<8x128xi32>
    %357 = vector.broadcast %354 : i32 to vector<8x128xi32>
    %358 = arith.cmpi sle, %0, %357 : vector<8x128xi32>
    %359 = arith.andi %356, %358 : vector<8x128xi1>
    %360 = arith.select %359, %352, %1 : vector<8x128xi1>, vector<8x128xf32>
    %c1_i32_206 = arith.constant 1 : i32
    %361 = tpu.dynamic_rotate %360 by %c1_i32_206 dim 1 : vector<8x128xf32>, i32 -> vector<8x128xf32>
    %c0_207 = arith.constant 0 : index
    %c0_208 = arith.constant 0 : index
    %c13 = arith.constant 13 : index
    %c0_209 = arith.constant 0 : index
    %c0_210 = arith.constant 0 : index
    %362 = vector.load %arg1[%c0_207, %c0_208, %c13, %c0_209, %c0_210] : memref<1x3x17x8x128xf32, #tpu.memory_space<vmem>>, vector<1x1x1x8x128xf32>
    %363 = vector.shape_cast %362 : vector<1x1x1x8x128xf32> to vector<8x128xf32>
    %364 = arith.addf %363, %331 : vector<8x128xf32>
    %c0_211 = arith.constant 0 : index
    %c1_212 = arith.constant 1 : index
    %c13_213 = arith.constant 13 : index
    %c0_214 = arith.constant 0 : index
    %c0_215 = arith.constant 0 : index
    %365 = vector.load %arg1[%c0_211, %c1_212, %c13_213, %c0_214, %c0_215] : memref<1x3x17x8x128xf32, #tpu.memory_space<vmem>>, vector<1x1x1x8x128xf32>
    %366 = vector.shape_cast %365 : vector<1x1x1x8x128xf32> to vector<8x128xf32>
    %367 = arith.addf %366, %361 : vector<8x128xf32>
    %c0_216 = arith.constant 0 : index
    %c2_217 = arith.constant 2 : index
    %c13_218 = arith.constant 13 : index
    %c0_219 = arith.constant 0 : index
    %c0_220 = arith.constant 0 : index
    %368 = vector.load %arg1[%c0_216, %c2_217, %c13_218, %c0_219, %c0_220] : memref<1x3x17x8x128xf32, #tpu.memory_space<vmem>>, vector<1x1x1x8x128xf32>
    %369 = vector.shape_cast %368 : vector<1x1x1x8x128xf32> to vector<8x128xf32>
    %370 = arith.addf %369, %360 : vector<8x128xf32>
    %371 = arith.maximumf %367, %364 : vector<8x128xf32>
    %372 = arith.maximumf %371, %370 : vector<8x128xf32>
    %373 = arith.subf %367, %372 : vector<8x128xf32>
    %374 = math.exp %373 : vector<8x128xf32>
    %375 = arith.subf %364, %372 : vector<8x128xf32>
    %376 = math.exp %375 : vector<8x128xf32>
    %377 = arith.addf %374, %376 : vector<8x128xf32>
    %378 = arith.subf %370, %372 : vector<8x128xf32>
    %379 = math.exp %378 : vector<8x128xf32>
    %380 = arith.addf %377, %379 : vector<8x128xf32>
    %381 = math.log %380 : vector<8x128xf32>
    %382 = arith.addf %372, %381 : vector<8x128xf32>
    %c0_i32_221 = arith.constant 0 : i32
    %c5_i32_222 = arith.constant 5 : i32
    %383 = arith.maxsi %c0_i32_221, %c5_i32_222 : i32
    %c8_i32_223 = arith.constant 8 : i32
    %c13_i32 = arith.constant 13 : i32
    %384 = arith.minsi %c8_i32_223, %c13_i32 : i32
    %385 = vector.broadcast %383 : i32 to vector<8x128xi32>
    %386 = arith.cmpi sge, %0, %385 : vector<8x128xi32>
    %387 = vector.broadcast %384 : i32 to vector<8x128xi32>
    %388 = arith.cmpi sle, %0, %387 : vector<8x128xi32>
    %389 = arith.andi %386, %388 : vector<8x128xi1>
    %390 = arith.select %389, %382, %1 : vector<8x128xi1>, vector<8x128xf32>
    %c1_i32_224 = arith.constant 1 : i32
    %391 = tpu.dynamic_rotate %390 by %c1_i32_224 dim 1 : vector<8x128xf32>, i32 -> vector<8x128xf32>
    %c0_225 = arith.constant 0 : index
    %c0_226 = arith.constant 0 : index
    %c14 = arith.constant 14 : index
    %c0_227 = arith.constant 0 : index
    %c0_228 = arith.constant 0 : index
    %392 = vector.load %arg1[%c0_225, %c0_226, %c14, %c0_227, %c0_228] : memref<1x3x17x8x128xf32, #tpu.memory_space<vmem>>, vector<1x1x1x8x128xf32>
    %393 = vector.shape_cast %392 : vector<1x1x1x8x128xf32> to vector<8x128xf32>
    %394 = arith.addf %393, %361 : vector<8x128xf32>
    %c0_229 = arith.constant 0 : index
    %c1_230 = arith.constant 1 : index
    %c14_231 = arith.constant 14 : index
    %c0_232 = arith.constant 0 : index
    %c0_233 = arith.constant 0 : index
    %395 = vector.load %arg1[%c0_229, %c1_230, %c14_231, %c0_232, %c0_233] : memref<1x3x17x8x128xf32, #tpu.memory_space<vmem>>, vector<1x1x1x8x128xf32>
    %396 = vector.shape_cast %395 : vector<1x1x1x8x128xf32> to vector<8x128xf32>
    %397 = arith.addf %396, %391 : vector<8x128xf32>
    %c0_234 = arith.constant 0 : index
    %c2_235 = arith.constant 2 : index
    %c14_236 = arith.constant 14 : index
    %c0_237 = arith.constant 0 : index
    %c0_238 = arith.constant 0 : index
    %398 = vector.load %arg1[%c0_234, %c2_235, %c14_236, %c0_237, %c0_238] : memref<1x3x17x8x128xf32, #tpu.memory_space<vmem>>, vector<1x1x1x8x128xf32>
    %399 = vector.shape_cast %398 : vector<1x1x1x8x128xf32> to vector<8x128xf32>
    %400 = arith.addf %399, %390 : vector<8x128xf32>
    %401 = arith.maximumf %397, %394 : vector<8x128xf32>
    %402 = arith.maximumf %401, %400 : vector<8x128xf32>
    %403 = arith.subf %397, %402 : vector<8x128xf32>
    %404 = math.exp %403 : vector<8x128xf32>
    %405 = arith.subf %394, %402 : vector<8x128xf32>
    %406 = math.exp %405 : vector<8x128xf32>
    %407 = arith.addf %404, %406 : vector<8x128xf32>
    %408 = arith.subf %400, %402 : vector<8x128xf32>
    %409 = math.exp %408 : vector<8x128xf32>
    %410 = arith.addf %407, %409 : vector<8x128xf32>
    %411 = math.log %410 : vector<8x128xf32>
    %412 = arith.addf %402, %411 : vector<8x128xf32>
    %c0_i32_239 = arith.constant 0 : i32
    %c6_i32_240 = arith.constant 6 : i32
    %413 = arith.maxsi %c0_i32_239, %c6_i32_240 : i32
    %c8_i32_241 = arith.constant 8 : i32
    %c14_i32 = arith.constant 14 : i32
    %414 = arith.minsi %c8_i32_241, %c14_i32 : i32
    %415 = vector.broadcast %413 : i32 to vector<8x128xi32>
    %416 = arith.cmpi sge, %0, %415 : vector<8x128xi32>
    %417 = vector.broadcast %414 : i32 to vector<8x128xi32>
    %418 = arith.cmpi sle, %0, %417 : vector<8x128xi32>
    %419 = arith.andi %416, %418 : vector<8x128xi1>
    %420 = arith.select %419, %412, %1 : vector<8x128xi1>, vector<8x128xf32>
    %c1_i32_242 = arith.constant 1 : i32
    %421 = tpu.dynamic_rotate %420 by %c1_i32_242 dim 1 : vector<8x128xf32>, i32 -> vector<8x128xf32>
    %c0_243 = arith.constant 0 : index
    %c0_244 = arith.constant 0 : index
    %c15 = arith.constant 15 : index
    %c0_245 = arith.constant 0 : index
    %c0_246 = arith.constant 0 : index
    %422 = vector.load %arg1[%c0_243, %c0_244, %c15, %c0_245, %c0_246] : memref<1x3x17x8x128xf32, #tpu.memory_space<vmem>>, vector<1x1x1x8x128xf32>
    %423 = vector.shape_cast %422 : vector<1x1x1x8x128xf32> to vector<8x128xf32>
    %424 = arith.addf %423, %391 : vector<8x128xf32>
    %c0_247 = arith.constant 0 : index
    %c1_248 = arith.constant 1 : index
    %c15_249 = arith.constant 15 : index
    %c0_250 = arith.constant 0 : index
    %c0_251 = arith.constant 0 : index
    %425 = vector.load %arg1[%c0_247, %c1_248, %c15_249, %c0_250, %c0_251] : memref<1x3x17x8x128xf32, #tpu.memory_space<vmem>>, vector<1x1x1x8x128xf32>
    %426 = vector.shape_cast %425 : vector<1x1x1x8x128xf32> to vector<8x128xf32>
    %427 = arith.addf %426, %421 : vector<8x128xf32>
    %c0_252 = arith.constant 0 : index
    %c2_253 = arith.constant 2 : index
    %c15_254 = arith.constant 15 : index
    %c0_255 = arith.constant 0 : index
    %c0_256 = arith.constant 0 : index
    %428 = vector.load %arg1[%c0_252, %c2_253, %c15_254, %c0_255, %c0_256] : memref<1x3x17x8x128xf32, #tpu.memory_space<vmem>>, vector<1x1x1x8x128xf32>
    %429 = vector.shape_cast %428 : vector<1x1x1x8x128xf32> to vector<8x128xf32>
    %430 = arith.addf %429, %420 : vector<8x128xf32>
    %431 = arith.maximumf %427, %424 : vector<8x128xf32>
    %432 = arith.maximumf %431, %430 : vector<8x128xf32>
    %433 = arith.subf %427, %432 : vector<8x128xf32>
    %434 = math.exp %433 : vector<8x128xf32>
    %435 = arith.subf %424, %432 : vector<8x128xf32>
    %436 = math.exp %435 : vector<8x128xf32>
    %437 = arith.addf %434, %436 : vector<8x128xf32>
    %438 = arith.subf %430, %432 : vector<8x128xf32>
    %439 = math.exp %438 : vector<8x128xf32>
    %440 = arith.addf %437, %439 : vector<8x128xf32>
    %441 = math.log %440 : vector<8x128xf32>
    %442 = arith.addf %432, %441 : vector<8x128xf32>
    %c0_i32_257 = arith.constant 0 : i32
    %c7_i32_258 = arith.constant 7 : i32
    %443 = arith.maxsi %c0_i32_257, %c7_i32_258 : i32
    %c8_i32_259 = arith.constant 8 : i32
    %c15_i32 = arith.constant 15 : i32
    %444 = arith.minsi %c8_i32_259, %c15_i32 : i32
    %445 = vector.broadcast %443 : i32 to vector<8x128xi32>
    %446 = arith.cmpi sge, %0, %445 : vector<8x128xi32>
    %447 = vector.broadcast %444 : i32 to vector<8x128xi32>
    %448 = arith.cmpi sle, %0, %447 : vector<8x128xi32>
    %449 = arith.andi %446, %448 : vector<8x128xi1>
    %450 = arith.select %449, %442, %1 : vector<8x128xi1>, vector<8x128xf32>
    %c1_i32_260 = arith.constant 1 : i32
    %451 = tpu.dynamic_rotate %450 by %c1_i32_260 dim 1 : vector<8x128xf32>, i32 -> vector<8x128xf32>
    %c0_261 = arith.constant 0 : index
    %c0_262 = arith.constant 0 : index
    %c16 = arith.constant 16 : index
    %c0_263 = arith.constant 0 : index
    %c0_264 = arith.constant 0 : index
    %452 = vector.load %arg1[%c0_261, %c0_262, %c16, %c0_263, %c0_264] : memref<1x3x17x8x128xf32, #tpu.memory_space<vmem>>, vector<1x1x1x8x128xf32>
    %453 = vector.shape_cast %452 : vector<1x1x1x8x128xf32> to vector<8x128xf32>
    %454 = arith.addf %453, %421 : vector<8x128xf32>
    %c0_265 = arith.constant 0 : index
    %c1_266 = arith.constant 1 : index
    %c16_267 = arith.constant 16 : index
    %c0_268 = arith.constant 0 : index
    %c0_269 = arith.constant 0 : index
    %455 = vector.load %arg1[%c0_265, %c1_266, %c16_267, %c0_268, %c0_269] : memref<1x3x17x8x128xf32, #tpu.memory_space<vmem>>, vector<1x1x1x8x128xf32>
    %456 = vector.shape_cast %455 : vector<1x1x1x8x128xf32> to vector<8x128xf32>
    %457 = arith.addf %456, %451 : vector<8x128xf32>
    %c0_270 = arith.constant 0 : index
    %c2_271 = arith.constant 2 : index
    %c16_272 = arith.constant 16 : index
    %c0_273 = arith.constant 0 : index
    %c0_274 = arith.constant 0 : index
    %458 = vector.load %arg1[%c0_270, %c2_271, %c16_272, %c0_273, %c0_274] : memref<1x3x17x8x128xf32, #tpu.memory_space<vmem>>, vector<1x1x1x8x128xf32>
    %459 = vector.shape_cast %458 : vector<1x1x1x8x128xf32> to vector<8x128xf32>
    %460 = arith.addf %459, %450 : vector<8x128xf32>
    %461 = arith.maximumf %457, %454 : vector<8x128xf32>
    %462 = arith.maximumf %461, %460 : vector<8x128xf32>
    %463 = arith.subf %457, %462 : vector<8x128xf32>
    %464 = math.exp %463 : vector<8x128xf32>
    %465 = arith.subf %454, %462 : vector<8x128xf32>
    %466 = math.exp %465 : vector<8x128xf32>
    %467 = arith.addf %464, %466 : vector<8x128xf32>
    %468 = arith.subf %460, %462 : vector<8x128xf32>
    %469 = math.exp %468 : vector<8x128xf32>
    %470 = arith.addf %467, %469 : vector<8x128xf32>
    %471 = math.log %470 : vector<8x128xf32>
    %472 = arith.addf %462, %471 : vector<8x128xf32>
    %c0_i32_275 = arith.constant 0 : i32
    %c8_i32_276 = arith.constant 8 : i32
    %473 = arith.maxsi %c0_i32_275, %c8_i32_276 : i32
    %c8_i32_277 = arith.constant 8 : i32
    %c16_i32 = arith.constant 16 : i32
    %474 = arith.minsi %c8_i32_277, %c16_i32 : i32
    %475 = vector.broadcast %473 : i32 to vector<8x128xi32>
    %476 = arith.cmpi sge, %0, %475 : vector<8x128xi32>
    %477 = vector.broadcast %474 : i32 to vector<8x128xi32>
    %478 = arith.cmpi sle, %0, %477 : vector<8x128xi32>
    %479 = arith.andi %476, %478 : vector<8x128xi1>
    %480 = arith.select %479, %472, %1 : vector<8x128xi1>, vector<8x128xf32>
    %c0_278 = arith.constant 0 : index
    %c0_279 = arith.constant 0 : index
    %481 = vector.load %arg2[%c0_278, %c0_279] : memref<8x128xf32, #tpu.memory_space<vmem>>, vector<8x128xf32>
    tpu.vector_store %arg2[%c0_278, %c0_279], %480 {strides = array<i32>} : memref<8x128xf32, #tpu.memory_space<vmem>>, vector<8x128xf32>,
    return
  }
  func.func @transform_0(%arg0: i32) -> (i32, i32, i32, i32, i32) {
    %c0_i32 = arith.constant 0 : i32
    %c0_i32_0 = arith.constant 0 : i32
    %c0_i32_1 = arith.constant 0 : i32
    %c0_i32_2 = arith.constant 0 : i32
    %c0_i32_3 = arith.constant 0 : i32
    return %arg0, %c0_i32, %c0_i32_0, %c0_i32_1, %c0_i32_2 : i32, i32, i32, i32, i32
  }
  func.func @transform_1(%arg0: i32) -> (i32, i32) {
    %c0_i32 = arith.constant 0 : i32
    %c0_i32_0 = arith.constant 0 : i32
    return %arg0, %c0_i32 : i32, i32
  }
}

</mosaic_0001>

<llo_original>
// kernel: nw_forward_batched.1
$region0: #{nw_forward_batched.1}
  #allocation0 [shape = 'u32[]', space=smem, size = 0x4, offset = 0x4, fixed_abs, tag = 'smem constant byte address 0x4 - core index']
  #allocation1 [shape = 'u32[144,128]{1,0:T(1,128)}', space=vmem, size = 0x12000, scoped, tag = 'internal scratch']
  %s0 = inlined_call_operand.vmem [shape: f32[1,3,17,8,128], index: 0, kind: input, shape index: {}]
  %s1 = inlined_call_operand.vmem [shape: f32[8,128], index: 1, kind: output, shape index: {}]
  %s2 = sld [smem:[#allocation0]]
  $region14: #{nw_forward_batched.1} parent=0
    _
  %s4 = ssub.s32 1, %s2
  %s5 = scalar_select 0, %s4, %s2
  // Predicated region
  $region2: #{nw_forward_batched.1} parent=0 // pred_check
    _
  $region3: #{nw_forward_batched.1} parent=0 // pred_check_branch
    %7 = sbr.rel (0) target = $region5
  $region4: #{nw_forward_batched.1} parent=0 // pred_region
    _
  $region5: #{nw_forward_batched.1} parent=0 // pred_fallthru
    _
  %v8 = vlaneseq
  %v9 = vand.u32 %v8, 127
  %s10 = scalar_lea.vmem %s0, 8
  %v11 = vld [vmem:[%s10] sm:$0xff]
  %v12 = vadd.f32 %v11, 0.0
  %s13 = scalar_lea.vmem %s0, 144
  %v14 = vld [vmem:[%s13] sm:$0xff]
  %v15 = vadd.f32 %v14, 0.0
  %s16 = scalar_lea.vmem %s0, 280
  %v17 = vld [vmem:[%s16] sm:$0xff]
  %v18 = vadd.f32 %v17, 0.0
  %v19 = vmax.f32 %v15, %v12
  %v20 = vmax.f32 %v19, %v18
  %v21 = vsub.f32 %v15, %v20
  %v22 = vmul.f32 %v21, 1.442695
  %v23 = vpow.pop %v22
  %v24 = vsub.f32 %v12, %v20
  %v25 = vmul.f32 %v24, 1.442695
  %v26 = vpow.pop %v25
  %v27 = vadd.f32 %v23, %v26
  %v28 = vsub.f32 %v18, %v20
  %v29 = vmul.f32 %v28, 1.442695
  %v30 = vpow.pop %v29
  %v31 = vadd.f32 %v27, %v30
  %v32 = vlog2.pop %v31
  %v33 = vmul.f32 %v32, 0.6931472
  %v34 = vadd.f32 %v20, %v33
  %vm35 = vcmp.ge.s32.totalorder %v9, 0
  %vm36 = vcmp.le.s32.totalorder %v9, 1
  %vm37 = vmand %vm35, %vm36
  %v38 = vsel %vm37, %v34, 0.0
  %39 = vrot.lane.b32.xlu0 %v38, 1
  %v40 = vpop.permute.xlu0 %39
  %s41 = scalar_lea.vmem %s0, 16
  %v42 = vld [vmem:[%s41] sm:$0xff]
  %v43 = vadd.f32 %v42, 0.0
  %s44 = scalar_lea.vmem %s0, 152
  %v45 = vld [vmem:[%s44] sm:$0xff]
  %v46 = vadd.f32 %v45, %v40
  %s47 = scalar_lea.vmem %s0, 288
  %v48 = vld [vmem:[%s47] sm:$0xff]
  %v49 = vadd.f32 %v48, %v38
  %v50 = vmax.f32 %v46, %v43
  %v51 = vmax.f32 %v50, %v49
  %v52 = vsub.f32 %v46, %v51
  %v53 = vmul.f32 %v52, 1.442695
  %v54 = vpow.pop %v53
  %v55 = vsub.f32 %v43, %v51
  %v56 = vmul.f32 %v55, 1.442695
  %v57 = vpow.pop %v56
  %v58 = vadd.f32 %v54, %v57
  %v59 = vsub.f32 %v49, %v51
  %v60 = vmul.f32 %v59, 1.442695
  %v61 = vpow.pop %v60
  %v62 = vadd.f32 %v58, %v61
  %v63 = vlog2.pop %v62
  %v64 = vmul.f32 %v63, 0.6931472
  %v65 = vadd.f32 %v51, %v64
  %vm66 = vcmp.le.s32.totalorder %v9, 2
  %vm67 = vmand %vm35, %vm66
  %v68 = vsel %vm67, %v65, 0.0
  %69 = vrot.lane.b32.xlu0 %v68, 1
  %v70 = vpop.permute.xlu0 %69
  %s71 = scalar_lea.vmem %s0, 24
  %v72 = vld [vmem:[%s71] sm:$0xff]
  %v73 = vadd.f32 %v72, %v40
  %s74 = scalar_lea.vmem %s0, 160
  %v75 = vld [vmem:[%s74] sm:$0xff]
  %v76 = vadd.f32 %v75, %v70
  %s77 = scalar_lea.vmem %s0, 296
  %v78 = vld [vmem:[%s77] sm:$0xff]
  %v79 = vadd.f32 %v78, %v68
  %v80 = vmax.f32 %v76, %v73
  %v81 = vmax.f32 %v80, %v79
  %v82 = vsub.f32 %v76, %v81
  %v83 = vmul.f32 %v82, 1.442695
  %v84 = vpow.pop %v83
  %v85 = vsub.f32 %v73, %v81
  %v86 = vmul.f32 %v85, 1.442695
  %v87 = vpow.pop %v86
  %v88 = vadd.f32 %v84, %v87
  %v89 = vsub.f32 %v79, %v81
  %v90 = vmul.f32 %v89, 1.442695
  %v91 = vpow.pop %v90
  %v92 = vadd.f32 %v88, %v91
  %v93 = vlog2.pop %v92
  %v94 = vmul.f32 %v93, 0.6931472
  %v95 = vadd.f32 %v81, %v94
  %vm96 = vcmp.le.s32.totalorder %v9, 3
  %vm97 = vmand %vm35, %vm96
  %v98 = vsel %vm97, %v95, 0.0
  %99 = vrot.lane.b32.xlu0 %v98, 1
  %v100 = vpop.permute.xlu0 %99
  %s101 = scalar_lea.vmem %s0, 32
  %v102 = vld [vmem:[%s101] sm:$0xff]
  %v103 = vadd.f32 %v102, %v70
  %s104 = scalar_lea.vmem %s0, 168
  %v105 = vld [vmem:[%s104] sm:$0xff]
  %v106 = vadd.f32 %v105, %v100
  %s107 = scalar_lea.vmem %s0, 304
  %v108 = vld [vmem:[%s107] sm:$0xff]
  %v109 = vadd.f32 %v108, %v98
  %v110 = vmax.f32 %v106, %v103
  %v111 = vmax.f32 %v110, %v109
  %v112 = vsub.f32 %v106, %v111
  %v113 = vmul.f32 %v112, 1.442695
  %v114 = vpow.pop %v113
  %v115 = vsub.f32 %v103, %v111
  %v116 = vmul.f32 %v115, 1.442695
  %v117 = vpow.pop %v116
  %v118 = vadd.f32 %v114, %v117
  %v119 = vsub.f32 %v109, %v111
  %v120 = vmul.f32 %v119, 1.442695
  %v121 = vpow.pop %v120
  %v122 = vadd.f32 %v118, %v121
  %v123 = vlog2.pop %v122
  %v124 = vmul.f32 %v123, 0.6931472
  %v125 = vadd.f32 %v111, %v124
  %vm126 = vcmp.le.s32.totalorder %v9, 4
  %vm127 = vmand %vm35, %vm126
  %v128 = vsel %vm127, %v125, 0.0
  %129 = vrot.lane.b32.xlu0 %v128, 1
  %v130 = vpop.permute.xlu0 %129
  %s131 = scalar_lea.vmem %s0, 40
  %v132 = vld [vmem:[%s131] sm:$0xff]
  %v133 = vadd.f32 %v132, %v100
  %s134 = scalar_lea.vmem %s0, 176
  %v135 = vld [vmem:[%s134] sm:$0xff]
  %v136 = vadd.f32 %v135, %v130
  %s137 = scalar_lea.vmem %s0, 312
  %v138 = vld [vmem:[%s137] sm:$0xff]
  %v139 = vadd.f32 %v138, %v128
  %v140 = vmax.f32 %v136, %v133
  %v141 = vmax.f32 %v140, %v139
  %v142 = vsub.f32 %v136, %v141
  %v143 = vmul.f32 %v142, 1.442695
  %v144 = vpow.pop %v143
  %v145 = vsub.f32 %v133, %v141
  %v146 = vmul.f32 %v145, 1.442695
  %v147 = vpow.pop %v146
  %v148 = vadd.f32 %v144, %v147
  %v149 = vsub.f32 %v139, %v141
  %v150 = vmul.f32 %v149, 1.442695
  %v151 = vpow.pop %v150
  %v152 = vadd.f32 %v148, %v151
  %v153 = vlog2.pop %v152
  %v154 = vmul.f32 %v153, 0.6931472
  %v155 = vadd.f32 %v141, %v154
  %vm156 = vcmp.le.s32.totalorder %v9, 5
  %vm157 = vmand %vm35, %vm156
  %v158 = vsel %vm157, %v155, 0.0
  %159 = vrot.lane.b32.xlu0 %v158, 1
  %v160 = vpop.permute.xlu0 %159
  %s161 = scalar_lea.vmem %s0, 48
  %v162 = vld [vmem:[%s161] sm:$0xff]
  %v163 = vadd.f32 %v162, %v130
  %s164 = scalar_lea.vmem %s0, 184
  %v165 = vld [vmem:[%s164] sm:$0xff]
  %v166 = vadd.f32 %v165, %v160
  %s167 = scalar_lea.vmem %s0, 320
  %v168 = vld [vmem:[%s167] sm:$0xff]
  %v169 = vadd.f32 %v168, %v158
  %v170 = vmax.f32 %v166, %v163
  %v171 = vmax.f32 %v170, %v169
  %v172 = vsub.f32 %v166, %v171
  %v173 = vmul.f32 %v172, 1.442695
  %v174 = vpow.pop %v173
  %v175 = vsub.f32 %v163, %v171
  %v176 = vmul.f32 %v175, 1.442695
  %v177 = vpow.pop %v176
  %v178 = vadd.f32 %v174, %v177
  %v179 = vsub.f32 %v169, %v171
  %v180 = vmul.f32 %v179, 1.442695
  %v181 = vpow.pop %v180
  %v182 = vadd.f32 %v178, %v181
  %v183 = vlog2.pop %v182
  %v184 = vmul.f32 %v183, 0.6931472
  %v185 = vadd.f32 %v171, %v184
  %vm186 = vcmp.le.s32.totalorder %v9, 6
  %vm187 = vmand %vm35, %vm186
  %v188 = vsel %vm187, %v185, 0.0
  %189 = vrot.lane.b32.xlu0 %v188, 1
  %v190 = vpop.permute.xlu0 %189
  %s191 = scalar_lea.vmem %s0, 56
  %v192 = vld [vmem:[%s191] sm:$0xff]
  %v193 = vadd.f32 %v192, %v160
  %s194 = scalar_lea.vmem %s0, 192
  %v195 = vld [vmem:[%s194] sm:$0xff]
  %v196 = vadd.f32 %v195, %v190
  %s197 = scalar_lea.vmem %s0, 328
  %v198 = vld [vmem:[%s197] sm:$0xff]
  %v199 = vadd.f32 %v198, %v188
  %v200 = vmax.f32 %v196, %v193
  %v201 = vmax.f32 %v200, %v199
  %v202 = vsub.f32 %v196, %v201
  %v203 = vmul.f32 %v202, 1.442695
  %v204 = vpow.pop %v203
  %v205 = vsub.f32 %v193, %v201
  %v206 = vmul.f32 %v205, 1.442695
  %v207 = vpow.pop %v206
  %v208 = vadd.f32 %v204, %v207
  %v209 = vsub.f32 %v199, %v201
  %v210 = vmul.f32 %v209, 1.442695
  %v211 = vpow.pop %v210
  %v212 = vadd.f32 %v208, %v211
  %v213 = vlog2.pop %v212
  %v214 = vmul.f32 %v213, 0.6931472
  %v215 = vadd.f32 %v201, %v214
  %vm216 = vcmp.le.s32.totalorder %v9, 7
  %vm217 = vmand %vm35, %vm216
  %v218 = vsel %vm217, %v215, 0.0
  %219 = vrot.lane.b32.xlu0 %v218, 1
  %v220 = vpop.permute.xlu0 %219
  %s221 = scalar_lea.vmem %s0, 64
  %v222 = vld [vmem:[%s221] sm:$0xff]
  %v223 = vadd.f32 %v222, %v190
  %s224 = scalar_lea.vmem %s0, 200
  %v225 = vld [vmem:[%s224] sm:$0xff]
  %v226 = vadd.f32 %v225, %v220
  %s227 = scalar_lea.vmem %s0, 336
  %v228 = vld [vmem:[%s227] sm:$0xff]
  %v229 = vadd.f32 %v228, %v218
  %v230 = vmax.f32 %v226, %v223
  %v231 = vmax.f32 %v230, %v229
  %v232 = vsub.f32 %v226, %v231
  %v233 = vmul.f32 %v232, 1.442695
  %v234 = vpow.pop %v233
  %v235 = vsub.f32 %v223, %v231
  %v236 = vmul.f32 %v235, 1.442695
  %v237 = vpow.pop %v236
  %v238 = vadd.f32 %v234, %v237
  %v239 = vsub.f32 %v229, %v231
  %v240 = vmul.f32 %v239, 1.442695
  %v241 = vpow.pop %v240
  %v242 = vadd.f32 %v238, %v241
  %v243 = vlog2.pop %v242
  %v244 = vmul.f32 %v243, 0.6931472
  %v245 = vadd.f32 %v231, %v244
  %vm246 = vcmp.le.s32.totalorder %v9, 8
  %vm247 = vmand %vm35, %vm246
  %v248 = vsel %vm247, %v245, 0.0
  %249 = vrot.lane.b32.xlu0 %v248, 1
  %v250 = vpop.permute.xlu0 %249
  %s251 = scalar_lea.vmem %s0, 72
  %v252 = vld [vmem:[%s251] sm:$0xff]
  %v253 = vadd.f32 %v252, %v220
  %s254 = scalar_lea.vmem %s0, 208
  %v255 = vld [vmem:[%s254] sm:$0xff]
  %v256 = vadd.f32 %v255, %v250
  %s257 = scalar_lea.vmem %s0, 344
  %v258 = vld [vmem:[%s257] sm:$0xff]
  %v259 = vadd.f32 %v258, %v248
  %v260 = vmax.f32 %v256, %v253
  %v261 = vmax.f32 %v260, %v259
  %v262 = vsub.f32 %v256, %v261
  %v263 = vmul.f32 %v262, 1.442695
  %v264 = vpow.pop %v263
  %v265 = vsub.f32 %v253, %v261
  %v266 = vmul.f32 %v265, 1.442695
  %v267 = vpow.pop %v266
  %v268 = vadd.f32 %v264, %v267
  %v269 = vsub.f32 %v259, %v261
  %v270 = vmul.f32 %v269, 1.442695
  %v271 = vpow.pop %v270
  %v272 = vadd.f32 %v268, %v271
  %v273 = vlog2.pop %v272
  %v274 = vmul.f32 %v273, 0.6931472
  %v275 = vadd.f32 %v261, %v274
  %vm276 = vcmp.ge.s32.totalorder %v9, 1
  %vm277 = vmand %vm276, %vm246
  %v278 = vsel %vm277, %v275, 0.0
  %279 = vrot.lane.b32.xlu0 %v278, 1
  %v280 = vpop.permute.xlu0 %279
  %s281 = scalar_lea.vmem %s0, 80
  %v282 = vld [vmem:[%s281] sm:$0xff]
  %v283 = vadd.f32 %v282, %v250
  %s284 = scalar_lea.vmem %s0, 216
  %v285 = vld [vmem:[%s284] sm:$0xff]
  %v286 = vadd.f32 %v285, %v280
  %s287 = scalar_lea.vmem %s0, 352
  %v288 = vld [vmem:[%s287] sm:$0xff]
  %v289 = vadd.f32 %v288, %v278
  %v290 = vmax.f32 %v286, %v283
  %v291 = vmax.f32 %v290, %v289
  %v292 = vsub.f32 %v286, %v291
  %v293 = vmul.f32 %v292, 1.442695
  %v294 = vpow.pop %v293
  %v295 = vsub.f32 %v283, %v291
  %v296 = vmul.f32 %v295, 1.442695
  %v297 = vpow.pop %v296
  %v298 = vadd.f32 %v294, %v297
  %v299 = vsub.f32 %v289, %v291
  %v300 = vmul.f32 %v299, 1.442695
  %v301 = vpow.pop %v300
  %v302 = vadd.f32 %v298, %v301
  %v303 = vlog2.pop %v302
  %v304 = vmul.f32 %v303, 0.6931472
  %v305 = vadd.f32 %v291, %v304
  %vm306 = vcmp.ge.s32.totalorder %v9, 2
  %vm307 = vmand %vm306, %vm246
  %v308 = vsel %vm307, %v305, 0.0
  %309 = vrot.lane.b32.xlu0 %v308, 1
  %v310 = vpop.permute.xlu0 %309
  %s311 = scalar_lea.vmem %s0, 88
  %v312 = vld [vmem:[%s311] sm:$0xff]
  %v313 = vadd.f32 %v312, %v280
  %s314 = scalar_lea.vmem %s0, 224
  %v315 = vld [vmem:[%s314] sm:$0xff]
  %v316 = vadd.f32 %v315, %v310
  %s317 = scalar_lea.vmem %s0, 360
  %v318 = vld [vmem:[%s317] sm:$0xff]
  %v319 = vadd.f32 %v318, %v308
  %v320 = vmax.f32 %v316, %v313
  %v321 = vmax.f32 %v320, %v319
  %v322 = vsub.f32 %v316, %v321
  %v323 = vmul.f32 %v322, 1.442695
  %v324 = vpow.pop %v323
  %v325 = vsub.f32 %v313, %v321
  %v326 = vmul.f32 %v325, 1.442695
  %v327 = vpow.pop %v326
  %v328 = vadd.f32 %v324, %v327
  %v329 = vsub.f32 %v319, %v321
  %v330 = vmul.f32 %v329, 1.442695
  %v331 = vpow.pop %v330
  %v332 = vadd.f32 %v328, %v331
  %v333 = vlog2.pop %v332
  %v334 = vmul.f32 %v333, 0.6931472
  %v335 = vadd.f32 %v321, %v334
  %vm336 = vcmp.ge.s32.totalorder %v9, 3
  %vm337 = vmand %vm336, %vm246
  %v338 = vsel %vm337, %v335, 0.0
  %339 = vrot.lane.b32.xlu0 %v338, 1
  %v340 = vpop.permute.xlu0 %339
  %s341 = scalar_lea.vmem %s0, 96
  %v342 = vld [vmem:[%s341] sm:$0xff]
  %v343 = vadd.f32 %v342, %v310
  %s344 = scalar_lea.vmem %s0, 232
  %v345 = vld [vmem:[%s344] sm:$0xff]
  %v346 = vadd.f32 %v345, %v340
  %s347 = scalar_lea.vmem %s0, 368
  %v348 = vld [vmem:[%s347] sm:$0xff]
  %v349 = vadd.f32 %v348, %v338
  %v350 = vmax.f32 %v346, %v343
  %v351 = vmax.f32 %v350, %v349
  %v352 = vsub.f32 %v346, %v351
  %v353 = vmul.f32 %v352, 1.442695
  %v354 = vpow.pop %v353
  %v355 = vsub.f32 %v343, %v351
  %v356 = vmul.f32 %v355, 1.442695
  %v357 = vpow.pop %v356
  %v358 = vadd.f32 %v354, %v357
  %v359 = vsub.f32 %v349, %v351
  %v360 = vmul.f32 %v359, 1.442695
  %v361 = vpow.pop %v360
  %v362 = vadd.f32 %v358, %v361
  %v363 = vlog2.pop %v362
  %v364 = vmul.f32 %v363, 0.6931472
  %v365 = vadd.f32 %v351, %v364
  %vm366 = vcmp.ge.s32.totalorder %v9, 4
  %vm367 = vmand %vm366, %vm246
  %v368 = vsel %vm367, %v365, 0.0
  %369 = vrot.lane.b32.xlu0 %v368, 1
  %v370 = vpop.permute.xlu0 %369
  %s371 = scalar_lea.vmem %s0, 104
  %v372 = vld [vmem:[%s371] sm:$0xff]
  %v373 = vadd.f32 %v372, %v340
  %s374 = scalar_lea.vmem %s0, 240
  %v375 = vld [vmem:[%s374] sm:$0xff]
  %v376 = vadd.f32 %v375, %v370
  %s377 = scalar_lea.vmem %s0, 376
  %v378 = vld [vmem:[%s377] sm:$0xff]
  %v379 = vadd.f32 %v378, %v368
  %v380 = vmax.f32 %v376, %v373
  %v381 = vmax.f32 %v380, %v379
  %v382 = vsub.f32 %v376, %v381
  %v383 = vmul.f32 %v382, 1.442695
  %v384 = vpow.pop %v383
  %v385 = vsub.f32 %v373, %v381
  %v386 = vmul.f32 %v385, 1.442695
  %v387 = vpow.pop %v386
  %v388 = vadd.f32 %v384, %v387
  %v389 = vsub.f32 %v379, %v381
  %v390 = vmul.f32 %v389, 1.442695
  %v391 = vpow.pop %v390
  %v392 = vadd.f32 %v388, %v391
  %v393 = vlog2.pop %v392
  %v394 = vmul.f32 %v393, 0.6931472
  %v395 = vadd.f32 %v381, %v394
  %vm396 = vcmp.ge.s32.totalorder %v9, 5
  %vm397 = vmand %vm396, %vm246
  %v398 = vsel %vm397, %v395, 0.0
  %399 = vrot.lane.b32.xlu0 %v398, 1
  %v400 = vpop.permute.xlu0 %399
  %s401 = scalar_lea.vmem %s0, 112
  %v402 = vld [vmem:[%s401] sm:$0xff]
  %v403 = vadd.f32 %v402, %v370
  %s404 = scalar_lea.vmem %s0, 248
  %v405 = vld [vmem:[%s404] sm:$0xff]
  %v406 = vadd.f32 %v405, %v400
  %s407 = scalar_lea.vmem %s0, 384
  %v408 = vld [vmem:[%s407] sm:$0xff]
  %v409 = vadd.f32 %v408, %v398
  %v410 = vmax.f32 %v406, %v403
  %v411 = vmax.f32 %v410, %v409
  %v412 = vsub.f32 %v406, %v411
  %v413 = vmul.f32 %v412, 1.442695
  %v414 = vpow.pop %v413
  %v415 = vsub.f32 %v403, %v411
  %v416 = vmul.f32 %v415, 1.442695
  %v417 = vpow.pop %v416
  %v418 = vadd.f32 %v414, %v417
  %v419 = vsub.f32 %v409, %v411
  %v420 = vmul.f32 %v419, 1.442695
  %v421 = vpow.pop %v420
  %v422 = vadd.f32 %v418, %v421
  %v423 = vlog2.pop %v422
  %v424 = vmul.f32 %v423, 0.6931472
  %v425 = vadd.f32 %v411, %v424
  %vm426 = vcmp.ge.s32.totalorder %v9, 6
  %vm427 = vmand %vm426, %vm246
  %v428 = vsel %vm427, %v425, 0.0
  %429 = vrot.lane.b32.xlu0 %v428, 1
  %v430 = vpop.permute.xlu0 %429
  %s431 = scalar_lea.vmem %s0, 120
  %v432 = vld [vmem:[%s431] sm:$0xff]
  %v433 = vadd.f32 %v432, %v400
  %s434 = scalar_lea.vmem %s0, 256
  %v435 = vld [vmem:[%s434] sm:$0xff]
  %v436 = vadd.f32 %v435, %v430
  %s437 = scalar_lea.vmem %s0, 392
  %v438 = vld [vmem:[%s437] sm:$0xff]
  %v439 = vadd.f32 %v438, %v428
  %v440 = vmax.f32 %v436, %v433
  %v441 = vmax.f32 %v440, %v439
  %v442 = vsub.f32 %v436, %v441
  %v443 = vmul.f32 %v442, 1.442695
  %v444 = vpow.pop %v443
  %v445 = vsub.f32 %v433, %v441
  %v446 = vmul.f32 %v445, 1.442695
  %v447 = vpow.pop %v446
  %v448 = vadd.f32 %v444, %v447
  %v449 = vsub.f32 %v439, %v441
  %v450 = vmul.f32 %v449, 1.442695
  %v451 = vpow.pop %v450
  %v452 = vadd.f32 %v448, %v451
  %v453 = vlog2.pop %v452
  %v454 = vmul.f32 %v453, 0.6931472
  %v455 = vadd.f32 %v441, %v454
  %vm456 = vcmp.ge.s32.totalorder %v9, 7
  %vm457 = vmand %vm456, %vm246
  %v458 = vsel %vm457, %v455, 0.0
  %459 = vrot.lane.b32.xlu0 %v458, 1
  %v460 = vpop.permute.xlu0 %459
  %s461 = scalar_lea.vmem %s0, 128
  %v462 = vld [vmem:[%s461] sm:$0xff]
  %v463 = vadd.f32 %v462, %v430
  %s464 = scalar_lea.vmem %s0, 264
  %v465 = vld [vmem:[%s464] sm:$0xff]
  %v466 = vadd.f32 %v465, %v460
  %s467 = scalar_lea.vmem %s0, 400
  %v468 = vld [vmem:[%s467] sm:$0xff]
  %v469 = vadd.f32 %v468, %v458
  %v470 = vmax.f32 %v466, %v463
  %v471 = vmax.f32 %v470, %v469
  %v472 = vsub.f32 %v466, %v471
  %v473 = vmul.f32 %v472, 1.442695
  %v474 = vpow.pop %v473
  %v475 = vsub.f32 %v463, %v471
  %v476 = vmul.f32 %v475, 1.442695
  %v477 = vpow.pop %v476
  %v478 = vadd.f32 %v474, %v477
  %v479 = vsub.f32 %v469, %v471
  %v480 = vmul.f32 %v479, 1.442695
  %v481 = vpow.pop %v480
  %v482 = vadd.f32 %v478, %v481
  %v483 = vlog2.pop %v482
  %v484 = vmul.f32 %v483, 0.6931472
  %v485 = vadd.f32 %v471, %v484
  %vm486 = vcmp.ge.s32.totalorder %v9, 8
  %vm487 = vmand %vm486, %vm246
  %v488 = vsel %vm487, %v485, 0.0
  %489 = vst [vmem:[%s1] sm:$0xff] %v488
  // Predicated region
  $region6: #{nw_forward_batched.1} parent=0 // pred_check
    _
  $region7: #{nw_forward_batched.1} parent=0 // pred_check_branch
    %491 = sbr.rel (0) target = $region9
  $region8: #{nw_forward_batched.1} parent=0 // pred_region
    _
  $region9: #{nw_forward_batched.1} parent=0 // pred_fallthru
    _
  // Predicated region
  $region10: #{nw_forward_batched.1} parent=0 // pred_check
    _
  $region11: #{nw_forward_batched.1} parent=0 // pred_check_branch
    %493 = sbr.rel (0) target = $region13
  $region12: #{nw_forward_batched.1} parent=0 // pred_region
    _
  $region13: #{nw_forward_batched.1} parent=0 // pred_fallthru
    _

</llo_original>
